<compile_context>
chip_gen: v7x
topology: tpu7x:2x2x1
jax: 0.10.0
libtpu: 0.0.40
codegen_flags: <defaults>
</compile_context>

<pallas_src>
import functools
import math

import jax
import jax.numpy as jnp
from jax.experimental import pallas as pl
from jax.experimental.pallas import tpu as pltpu


def _layer_norm(y, g, b, eps=1e-5):
    mu = jnp.mean(y, axis=-1, keepdims=True)
    var = jnp.mean(jnp.square(y - mu), axis=-1, keepdims=True)
    return (y - mu) * jax.lax.rsqrt(var + eps) * g + b


def _encoder_stack_kernel(x_ref, bias_ref, wqkv_ref, wo_ref, w1_ref, w2_ref,
                          vec_ref, b1_ref, out_ref, *, num_heads, seq_len):
    l = pl.program_id(1)

    # Layer 0 of each batch tile: seed the VMEM-resident layer state (= the output block).
    @pl.when(l == 0)
    def _init():
        out_ref[...] = x_ref[...]

    x = out_ref[...]                       # (Nt, D) f32, resident across the layer axis
    Nt, D = x.shape
    T = seq_len
    Bt = Nt // T
    H = num_heads
    hd = D // H
    Z = H * Bt
    cdt = wqkv_ref.dtype                   # MXU compute dtype (bf16); accumulation is f32

    # packed per-layer vectors: [bq*scale, bk, bv, bo, ln1_g, ln1_b, b2, ln2_g, ln2_b]
    vec = vec_ref[0]                       # (9, D) f32

    # ---- fused QKV projection: one (Nt, D) @ (D, 3D) MXU matmul ----
    xc = x.astype(cdt)
    qkv = jnp.dot(xc, wqkv_ref[0], preferred_element_type=jnp.float32)   # (Nt, 3D)

    def split_heads(t):                    # (Nt, D) -> (H*Bt, T, hd), z = h*Bt + b
        t3 = t.reshape(Nt, H, hd)
        t3 = pltpu.einshape("nhd->hnd", t3)     # single layout op (no per-head Python loops)
        return t3.reshape(Z, T, hd)

    q = split_heads((qkv[:, :D] + vec[0:1]).astype(cdt))      # 1/sqrt(hd) folded into Wq/bq
    k = split_heads((qkv[:, D:2 * D] + vec[1:2]).astype(cdt))
    v = split_heads((qkv[:, 2 * D:] + vec[2:3]).astype(cdt))

    # ---- attention: ONE batched matmul over all (head, batch) pairs ----
    s = jax.lax.dot_general(q, k, (((2,), (2,)), ((0,), (0,))),
                            preferred_element_type=jnp.float32)          # (Z, Tq, Tk)
    s4 = s.reshape(H, Bt, T, T) + bias_ref[...][None]   # lane-dense (Bt,1,T) bias, broadcast
    s4 = s4 - jnp.max(s4, axis=-1, keepdims=True)
    p4 = jnp.exp(s4)
    p4 = p4 * pl.reciprocal(jnp.sum(p4, axis=-1, keepdims=True), approx=True)
    p = p4.reshape(Z, T, T)

    o = jax.lax.dot_general(p.astype(cdt), v, (((2,), (1,)), ((0,), (0,))),
                            preferred_element_type=jnp.float32)          # (Z, T, hd)

    # merge heads back to (Nt, D): single layout op
    attn = pltpu.einshape("hnd->nhd", o.reshape(H, Nt, hd)).reshape(Nt, D)
    attn = jnp.dot(attn.astype(cdt), wo_ref[0],
                   preferred_element_type=jnp.float32) + vec[3:4]

    # ---- Add & LayerNorm 1, FFN, Add & LayerNorm 2 (all float32 elementwise) ----
    h1 = _layer_norm(attn + x, vec[4:5], vec[5:6])
    # TODO(synk): for very large Nt*F, chunk the FFN over row tiles (lax.fori_loop) to bound VMEM.
    ff = jnp.maximum(
        jnp.dot(h1.astype(cdt), w1_ref[0], preferred_element_type=jnp.float32) + b1_ref[0], 0.0)
    ff = jnp.dot(ff.astype(cdt), w2_ref[0], preferred_element_type=jnp.float32) + vec[6:7]
    out_ref[...] = _layer_norm(ff + h1, vec[7:8], vec[8:9])


def _pack_layers(layers, num_heads, mxu_dtype=jnp.bfloat16):
    """Stack per-layer params to (L, ...): fused QKV weight, bf16 matrices, packed bias slabs."""
    d = layers[0]["wq"].shape[0]
    scale = 1.0 / math.sqrt(d // num_heads)            # folded into Wq / bq at pack time
    wqkv = jnp.stack([jnp.concatenate([lp["wq"] * scale, lp["wk"], lp["wv"]], axis=1)
                      for lp in layers]).astype(mxu_dtype)            # (L, D, 3D)
    wo = jnp.stack([lp["wo"] for lp in layers]).astype(mxu_dtype)     # (L, D, D)
    w1 = jnp.stack([lp["w1"] for lp in layers]).astype(mxu_dtype)     # (L, D, F)
    w2 = jnp.stack([lp["w2"] for lp in layers]).astype(mxu_dtype)     # (L, F, D)
    vec = jnp.stack([jnp.concatenate(
        [lp["bq"] * scale, lp["bk"], lp["bv"], lp["bo"],
         lp["ln1_g"], lp["ln1_b"], lp["b2"], lp["ln2_g"], lp["ln2_b"]], axis=0)
        for lp in layers])                                            # (L, 9, D) f32
    b1 = jnp.stack([lp["b1"] for lp in layers])                       # (L, 1, F) f32
    return wqkv, wo, w1, w2, vec, b1


def encoder_forward(ids, mask, params, num_heads, batch_tile=None):
    """Embedding + pos-enc (XLA glue), then the fused all-layers Pallas kernel."""
    B, T = ids.shape
    emb = jnp.take(params["embedding"], ids, axis=0)                  # (B, T, D)
    D = emb.shape[-1]
    assert D % num_heads == 0
    x = (emb + params["pos_encoding"][:T][None, :, :]).reshape(B * T, D)

    H = num_heads
    L = len(params["layers"])
    F = params["layers"][0]["w1"].shape[1]

    # Batch-tile grid axis ("parallel"): feeds both v7x TensorCores and bounds the resident
    # activation / FFN intermediate footprint. Falls back to one tile if tiling is not legal.
    if batch_tile is None:
        batch_tile = B
    if B % batch_tile != 0 or (batch_tile != B and (batch_tile * T) % 8 != 0):
        batch_tile = B
    nB = B // batch_tile
    Nt = batch_tile * T

    wqkv, wo, w1, w2, vec, b1 = _pack_layers(params["layers"], H)

    # Lane-dense additive key-padding bias, broadcast over heads / query rows in-kernel.
    bias = ((1.0 - mask.astype(jnp.float32)) * (-1e9))[:, None, :]    # (B, 1, T)

    # Explicit scoped-VMEM budget: double-buffered streamed weights + resident blocks + headroom.
    per_layer_w = (3 * D * D + D * D + 2 * D * F) * 2 + (9 * D + F) * 4
    resident = 4 * Nt * D * 4 + B * T * 4
    interm = Nt * (3 * D + F + 8 * D) * 4 + 3 * H * batch_tile * T * T * 4
    vmem_limit = int(max(32 << 20, min(64 << 20, 2 * per_layer_w + resident + interm + (4 << 20))))
    # TODO(synk): for large D/F on v7x (64 MiB VMEM), stream W1/W2 in F-chunks from HBM
    # (memory_space=pl.ANY + pltpu.emit_pipeline) instead of whole double-buffered blocks.

    hd = D // H
    flops = nB * L * (2 * Nt * D * 3 * D + 2 * Nt * D * D
                      + 4 * H * batch_tile * T * T * hd + 4 * Nt * D * F)
    transc = nB * L * H * batch_tile * T * T
    bytes_acc = (B * T * D * 4 * 2 + B * T * 4 + nB * L * per_layer_w)

    def wspec(shape):   # per-layer stacked operand, streamed along the layer grid axis
        return pl.BlockSpec((1,) + shape, lambda bi, l: (l,) + (0,) * len(shape))

    grid_spec = pltpu.PrefetchScalarGridSpec(
        num_scalar_prefetch=0,
        grid=(nB, L),
        in_specs=[
            pl.BlockSpec((Nt, D), lambda bi, l: (bi, 0)),                 # x (per batch tile)
            pl.BlockSpec((batch_tile, 1, T), lambda bi, l: (bi, 0, 0)),   # mask bias
            wspec((D, 3 * D)),      # fused Wqkv
            wspec((D, D)),          # Wo
            wspec((D, F)),          # W1
            wspec((F, D)),          # W2
            wspec((9, D)),          # packed bias / LN vector slab
            wspec((1, F)),          # b1
        ],
        out_specs=pl.BlockSpec((Nt, D), lambda bi, l: (bi, 0)),           # resident layer state
    )

    kernel = functools.partial(_encoder_stack_kernel, num_heads=H, seq_len=T)
    out_flat = pl.pallas_call(
        kernel,
        out_shape=jax.ShapeDtypeStruct((B * T, D), jnp.float32),
        grid_spec=grid_spec,
        compiler_params=pltpu.CompilerParams(
            dimension_semantics=("parallel", "arbitrary"),
            vmem_limit_bytes=vmem_limit),
        cost_estimate=pl.CostEstimate(flops=int(flops), transcendentals=int(transc),
                                      bytes_accessed=int(bytes_acc)),
    )(x, bias, wqkv, wo, w1, w2, vec, b1)
    return out_flat.reshape(B, T, D)


def sinusoidal_pos_encoding(block_size, d):
    pos = jnp.arange(block_size, dtype=jnp.float32)[:, None]
    i = jnp.arange(0, d, 2, dtype=jnp.float32)
    angle = pos / jnp.power(10000.0, i / d)
    pe = jnp.zeros((block_size, d), jnp.float32)
    pe = pe.at[:, 0::2].set(jnp.sin(angle))
    pe = pe.at[:, 1::2].set(jnp.cos(angle))
    return pe


def init_params(key, vocab, num_layers, d, block_size, ff_mult=4):
    keys = jax.random.split(key, 1 + num_layers)
    params = {
        "embedding": 0.02 * jax.random.normal(keys[0], (vocab, d), jnp.float32),
        "pos_encoding": sinusoidal_pos_encoding(block_size, d),
        "layers": [],
    }
    f = ff_mult * d
    for li in range(num_layers):
        ks = jax.random.split(keys[1 + li], 6)
        s = 1.0 / math.sqrt(d)
        lp = {
            "wq": s * jax.random.normal(ks[0], (d, d), jnp.float32), "bq": jnp.zeros((1, d), jnp.float32),
            "wk": s * jax.random.normal(ks[1], (d, d), jnp.float32), "bk": jnp.zeros((1, d), jnp.float32),
            "wv": s * jax.random.normal(ks[2], (d, d), jnp.float32), "bv": jnp.zeros((1, d), jnp.float32),
            "wo": s * jax.random.normal(ks[3], (d, d), jnp.float32), "bo": jnp.zeros((1, d), jnp.float32),
            "ln1_g": jnp.ones((1, d), jnp.float32), "ln1_b": jnp.zeros((1, d), jnp.float32),
            "w1": s * jax.random.normal(ks[4], (d, f), jnp.float32), "b1": jnp.zeros((1, f), jnp.float32),
            "w2": (1.0 / math.sqrt(f)) * jax.random.normal(ks[5], (f, d), jnp.float32),
            "b2": jnp.zeros((1, d), jnp.float32),
            "ln2_g": jnp.ones((1, d), jnp.float32), "ln2_b": jnp.zeros((1, d), jnp.float32),
        }
        params["layers"].append(lp)
    return params


if __name__ == "__main__":
    source_vocab_size = 50
    num_layers = 2
    n_embed = 32
    num_heads = 4
    block_size = 8     # sequence length T
    batch = 2

    key = jax.random.PRNGKey(0)
    k_ids, k_params = jax.random.split(key)
    ids = jax.random.randint(k_ids, (batch, block_size), 0, source_vocab_size, dtype=jnp.int32)
    # padding mask: 1 = real token, 0 = pad (last two positions of batch element 1 are padded)
    mask = jnp.ones((batch, block_size), jnp.float32).at[1, -2:].set(0.0)

    params = init_params(k_params, source_vocab_size, num_layers, n_embed, block_size)

    fwd = jax.jit(functools.partial(encoder_forward, num_heads=num_heads, batch_tile=1))
    out = jax.block_until_ready(fwd(ids, mask, params))
    assert out.shape == (batch, block_size, n_embed)
    assert bool(jnp.all(jnp.isfinite(out)))
    print("KERNEL_OK")
</pallas_src>

<mosaic_0001>
module attributes {stable_mosaic.version = 11 : i64} {
  func.func @_encoder_stack_kernel(%arg0: i32, %arg1: i32, %arg2: memref<8x32xf32, #tpu.memory_space<vmem>>, %arg3: memref<1x1x8xf32, #tpu.memory_space<vmem>>, %arg4: memref<1x32x96xbf16, #tpu.memory_space<vmem>>, %arg5: memref<1x32x32xbf16, #tpu.memory_space<vmem>>, %arg6: memref<1x32x128xbf16, #tpu.memory_space<vmem>>, %arg7: memref<1x128x32xbf16, #tpu.memory_space<vmem>>, %arg8: memref<1x9x32xf32, #tpu.memory_space<vmem>>, %arg9: memref<1x1x128xf32, #tpu.memory_space<vmem>>, %arg10: memref<8x32xf32, #tpu.memory_space<vmem>>) attributes {dimension_semantics = [#tpu.dimension_semantics<parallel>, #tpu.dimension_semantics<arbitrary>], iteration_bounds = array<i64: 2, 2>, scalar_prefetch = 0 : i64, scratch_operands = 0 : i64, tpu.core_type = #tpu.core_type<tc>, window_params = [{transform_indices = @transform_0, window_bounds = array<i64: 8, 32>}, {transform_indices = @transform_1, window_bounds = array<i64: 1, 1, 8>}, {transform_indices = @transform_2, window_bounds = array<i64: 1, 32, 96>}, {transform_indices = @transform_3, window_bounds = array<i64: 1, 32, 32>}, {transform_indices = @transform_4, window_bounds = array<i64: 1, 32, 128>}, {transform_indices = @transform_5, window_bounds = array<i64: 1, 128, 32>}, {transform_indices = @transform_6, window_bounds = array<i64: 1, 9, 32>}, {transform_indices = @transform_7, window_bounds = array<i64: 1, 1, 128>}, {transform_indices = @transform_8, window_bounds = array<i64: 8, 32>}]} {
    %c0_i32 = arith.constant 0 : i32
    %0 = arith.cmpi eq, %arg1, %c0_i32 : i32
    %1 = arith.extui %0 : i1 to i32
    %c0_i32_0 = arith.constant 0 : i32
    %2 = arith.cmpi ne, %1, %c0_i32_0 : i32
    scf.if %2 {
      %c0_43 = arith.constant 0 : index
      %c0_44 = arith.constant 0 : index
      %127 = vector.load %arg2[%c0_43, %c0_44] : memref<8x32xf32, #tpu.memory_space<vmem>>, vector<8x32xf32>
      %c0_45 = arith.constant 0 : index
      %c0_46 = arith.constant 0 : index
      %128 = vector.load %arg10[%c0_45, %c0_46] : memref<8x32xf32, #tpu.memory_space<vmem>>, vector<8x32xf32>
      tpu.vector_store %arg10[%c0_45, %c0_46], %127 {strides = array<i32>} : memref<8x32xf32, #tpu.memory_space<vmem>>, vector<8x32xf32>,
    } else {
    }
    %c0 = arith.constant 0 : index
    %c0_1 = arith.constant 0 : index
    %3 = vector.load %arg10[%c0, %c0_1] : memref<8x32xf32, #tpu.memory_space<vmem>>, vector<8x32xf32>
    %c0_2 = arith.constant 0 : index
    %c0_3 = arith.constant 0 : index
    %c0_4 = arith.constant 0 : index
    %4 = vector.load %arg8[%c0_2, %c0_3, %c0_4] : memref<1x9x32xf32, #tpu.memory_space<vmem>>, vector<1x9x32xf32>
    %5 = vector.shape_cast %4 : vector<1x9x32xf32> to vector<9x32xf32>
    %6 = arith.truncf %3 : vector<8x32xf32> to vector<8x32xbf16>
    %c0_5 = arith.constant 0 : index
    %c0_6 = arith.constant 0 : index
    %c0_7 = arith.constant 0 : index
    %7 = vector.load %arg4[%c0_5, %c0_6, %c0_7] : memref<1x32x96xbf16, #tpu.memory_space<vmem>>, vector<1x32x96xbf16>
    %8 = vector.shape_cast %7 : vector<1x32x96xbf16> to vector<32x96xbf16>
    %cst = arith.constant dense<0.000000e+00> : vector<8x96xf32>
    %9 = tpu.matmul %6, %8, %cst {dimension_numbers = #tpu.dot_dimension_numbers<[1], [0], [0], [1], [0, 0, 1, 1], [], []>} : vector<8x32xbf16>, vector<32x96xbf16>, vector<8x96xf32> -> vector<8x96xf32>
    %10 = vector.extract_strided_slice %9 {offsets = [0, 0], sizes = [8, 32], strides = [1, 1]} : vector<8x96xf32> to vector<8x32xf32>
    %11 = vector.extract_strided_slice %5 {offsets = [0, 0], sizes = [1, 32], strides = [1, 1]} : vector<9x32xf32> to vector<1x32xf32>
    %12 = vector.broadcast %11 : vector<1x32xf32> to vector<8x32xf32>
    %13 = arith.addf %10, %12 : vector<8x32xf32>
    %14 = arith.truncf %13 : vector<8x32xf32> to vector<8x32xbf16>
    %15 = vector.shape_cast %14 : vector<8x32xbf16> to vector<8x4x8xbf16>
    %16 = tpu.transpose %15, [1, 0, 2] : vector<8x4x8xbf16> -> vector<4x8x8xbf16>
    %17 = vector.extract_strided_slice %9 {offsets = [0, 32], sizes = [8, 32], strides = [1, 1]} : vector<8x96xf32> to vector<8x32xf32>
    %18 = vector.extract_strided_slice %5 {offsets = [1, 0], sizes = [1, 32], strides = [1, 1]} : vector<9x32xf32> to vector<1x32xf32>
    %19 = vector.broadcast %18 : vector<1x32xf32> to vector<8x32xf32>
    %20 = arith.addf %17, %19 : vector<8x32xf32>
    %21 = arith.truncf %20 : vector<8x32xf32> to vector<8x32xbf16>
    %22 = vector.shape_cast %21 : vector<8x32xbf16> to vector<8x4x8xbf16>
    %23 = tpu.transpose %22, [1, 0, 2] : vector<8x4x8xbf16> -> vector<4x8x8xbf16>
    %24 = vector.extract_strided_slice %9 {offsets = [0, 64], sizes = [8, 32], strides = [1, 1]} : vector<8x96xf32> to vector<8x32xf32>
    %25 = vector.extract_strided_slice %5 {offsets = [2, 0], sizes = [1, 32], strides = [1, 1]} : vector<9x32xf32> to vector<1x32xf32>
    %26 = vector.broadcast %25 : vector<1x32xf32> to vector<8x32xf32>
    %27 = arith.addf %24, %26 : vector<8x32xf32>
    %28 = arith.truncf %27 : vector<8x32xf32> to vector<8x32xbf16>
    %29 = vector.shape_cast %28 : vector<8x32xbf16> to vector<8x4x8xbf16>
    %30 = tpu.transpose %29, [1, 0, 2] : vector<8x4x8xbf16> -> vector<4x8x8xbf16>
    %cst_8 = arith.constant dense<0.000000e+00> : vector<4x8x8xf32>
    %31 = tpu.matmul %16, %23, %cst_8 {dimension_numbers = #tpu.dot_dimension_numbers<[2], [2], [1], [1], [0, 0, 0, 1, 1, 1], [0], [0]>} : vector<4x8x8xbf16>, vector<4x8x8xbf16>, vector<4x8x8xf32> -> vector<4x8x8xf32>
    %32 = vector.shape_cast %31 : vector<4x8x8xf32> to vector<4x1x8x8xf32>
    %c0_9 = arith.constant 0 : index
    %c0_10 = arith.constant 0 : index
    %c0_11 = arith.constant 0 : index
    %33 = vector.load %arg3[%c0_9, %c0_10, %c0_11] : memref<1x1x8xf32, #tpu.memory_space<vmem>>, vector<1x1x8xf32>
    %34 = vector.shape_cast %33 : vector<1x1x8xf32> to vector<1x1x1x8xf32>
    %35 = vector.broadcast %34 : vector<1x1x1x8xf32> to vector<4x1x8x8xf32>
    %36 = arith.addf %32, %35 : vector<4x1x8x8xf32>
    %cst_12 = arith.constant dense<0xFF800000> : vector<4x1x8xf32>
    %37 = vector.multi_reduction <maximumf>, %36, %cst_12 [3] : vector<4x1x8x8xf32> to vector<4x1x8xf32>
    %38 = vector.shape_cast %37 : vector<4x1x8xf32> to vector<4x1x8x1xf32>
    %39 = vector.broadcast %38 : vector<4x1x8x1xf32> to vector<4x1x8x8xf32>
    %40 = arith.subf %36, %39 : vector<4x1x8x8xf32>
    %41 = math.exp %40 : vector<4x1x8x8xf32>
    %cst_13 = arith.constant dense<0.000000e+00> : vector<4x1x8xf32>
    %42 = vector.multi_reduction <add>, %41, %cst_13 [3] : vector<4x1x8x8xf32> to vector<4x1x8xf32>
    %43 = vector.shape_cast %42 : vector<4x1x8xf32> to vector<4x1x8x1xf32>
    %44 = tpu.reciprocal %43 {approx = true} : vector<4x1x8x1xf32> -> vector<4x1x8x1xf32>
    %45 = vector.broadcast %44 : vector<4x1x8x1xf32> to vector<4x1x8x8xf32>
    %46 = arith.mulf %41, %45 : vector<4x1x8x8xf32>
    %47 = vector.shape_cast %46 : vector<4x1x8x8xf32> to vector<4x8x8xf32>
    %48 = arith.truncf %47 : vector<4x8x8xf32> to vector<4x8x8xbf16>
    %cst_14 = arith.constant dense<0.000000e+00> : vector<4x8x8xf32>
    %49 = tpu.matmul %48, %30, %cst_14 {dimension_numbers = #tpu.dot_dimension_numbers<[2], [1], [1], [2], [0, 0, 0, 1, 1, 2], [0], [0]>} : vector<4x8x8xbf16>, vector<4x8x8xbf16>, vector<4x8x8xf32> -> vector<4x8x8xf32>
    %50 = tpu.transpose %49, [1, 0, 2] : vector<4x8x8xf32> -> vector<8x4x8xf32>
    %51 = vector.shape_cast %50 : vector<8x4x8xf32> to vector<8x32xf32>
    %52 = arith.truncf %51 : vector<8x32xf32> to vector<8x32xbf16>
    %c0_15 = arith.constant 0 : index
    %c0_16 = arith.constant 0 : index
    %c0_17 = arith.constant 0 : index
    %53 = vector.load %arg5[%c0_15, %c0_16, %c0_17] : memref<1x32x32xbf16, #tpu.memory_space<vmem>>, vector<1x32x32xbf16>
    %54 = vector.shape_cast %53 : vector<1x32x32xbf16> to vector<32x32xbf16>
    %cst_18 = arith.constant dense<0.000000e+00> : vector<8x32xf32>
    %55 = tpu.matmul %52, %54, %cst_18 {dimension_numbers = #tpu.dot_dimension_numbers<[1], [0], [0], [1], [0, 0, 1, 1], [], []>} : vector<8x32xbf16>, vector<32x32xbf16>, vector<8x32xf32> -> vector<8x32xf32>
    %56 = vector.extract_strided_slice %5 {offsets = [3, 0], sizes = [1, 32], strides = [1, 1]} : vector<9x32xf32> to vector<1x32xf32>
    %57 = vector.broadcast %56 : vector<1x32xf32> to vector<8x32xf32>
    %58 = arith.addf %55, %57 : vector<8x32xf32>
    %59 = arith.addf %58, %3 : vector<8x32xf32>
    %60 = vector.extract_strided_slice %5 {offsets = [4, 0], sizes = [1, 32], strides = [1, 1]} : vector<9x32xf32> to vector<1x32xf32>
    %61 = vector.extract_strided_slice %5 {offsets = [5, 0], sizes = [1, 32], strides = [1, 1]} : vector<9x32xf32> to vector<1x32xf32>
    %cst_19 = arith.constant dense<0.000000e+00> : vector<8xf32>
    %62 = vector.multi_reduction <add>, %59, %cst_19 [1] : vector<8x32xf32> to vector<8xf32>
    %63 = vector.shape_cast %62 : vector<8xf32> to vector<8x1xf32>
    %cst_20 = arith.constant 3.200000e+01 : f32
    %64 = vector.broadcast %cst_20 : f32 to vector<8x1xf32>
    %65 = arith.divf %63, %64 : vector<8x1xf32>
    %66 = vector.broadcast %65 : vector<8x1xf32> to vector<8x32xf32>
    %67 = arith.subf %59, %66 : vector<8x32xf32>
    %68 = arith.mulf %67, %67 : vector<8x32xf32>
    %cst_21 = arith.constant dense<0.000000e+00> : vector<8xf32>
    %69 = vector.multi_reduction <add>, %68, %cst_21 [1] : vector<8x32xf32> to vector<8xf32>
    %70 = vector.shape_cast %69 : vector<8xf32> to vector<8x1xf32>
    %cst_22 = arith.constant 3.200000e+01 : f32
    %71 = vector.broadcast %cst_22 : f32 to vector<8x1xf32>
    %72 = arith.divf %70, %71 : vector<8x1xf32>
    %73 = vector.broadcast %65 : vector<8x1xf32> to vector<8x32xf32>
    %74 = arith.subf %59, %73 : vector<8x32xf32>
    %cst_23 = arith.constant 9.99999974E-6 : f32
    %75 = vector.broadcast %cst_23 : f32 to vector<8x1xf32>
    %76 = arith.addf %72, %75 : vector<8x1xf32>
    %77 = math.rsqrt %76 : vector<8x1xf32>
    %78 = vector.broadcast %77 : vector<8x1xf32> to vector<8x32xf32>
    %79 = arith.mulf %74, %78 : vector<8x32xf32>
    %80 = vector.broadcast %60 : vector<1x32xf32> to vector<8x32xf32>
    %81 = arith.mulf %79, %80 : vector<8x32xf32>
    %82 = vector.broadcast %61 : vector<1x32xf32> to vector<8x32xf32>
    %83 = arith.addf %81, %82 : vector<8x32xf32>
    %84 = arith.truncf %83 : vector<8x32xf32> to vector<8x32xbf16>
    %c0_24 = arith.constant 0 : index
    %c0_25 = arith.constant 0 : index
    %c0_26 = arith.constant 0 : index
    %85 = vector.load %arg6[%c0_24, %c0_25, %c0_26] : memref<1x32x128xbf16, #tpu.memory_space<vmem>>, vector<1x32x128xbf16>
    %86 = vector.shape_cast %85 : vector<1x32x128xbf16> to vector<32x128xbf16>
    %cst_27 = arith.constant dense<0.000000e+00> : vector<8x128xf32>
    %87 = tpu.matmul %84, %86, %cst_27 {dimension_numbers = #tpu.dot_dimension_numbers<[1], [0], [0], [1], [0, 0, 1, 1], [], []>} : vector<8x32xbf16>, vector<32x128xbf16>, vector<8x128xf32> -> vector<8x128xf32>
    %c0_28 = arith.constant 0 : index
    %c0_29 = arith.constant 0 : index
    %c0_30 = arith.constant 0 : index
    %88 = vector.load %arg9[%c0_28, %c0_29, %c0_30] : memref<1x1x128xf32, #tpu.memory_space<vmem>>, vector<1x1x128xf32>
    %89 = vector.shape_cast %88 : vector<1x1x128xf32> to vector<1x128xf32>
    %90 = vector.broadcast %89 : vector<1x128xf32> to vector<8x128xf32>
    %91 = arith.addf %87, %90 : vector<8x128xf32>
    %cst_31 = arith.constant 0.000000e+00 : f32
    %92 = vector.broadcast %cst_31 : f32 to vector<8x128xf32>
    %93 = arith.maximumf %91, %92 : vector<8x128xf32>
    %94 = arith.truncf %93 : vector<8x128xf32> to vector<8x128xbf16>
    %c0_32 = arith.constant 0 : index
    %c0_33 = arith.constant 0 : index
    %c0_34 = arith.constant 0 : index
    %95 = vector.load %arg7[%c0_32, %c0_33, %c0_34] : memref<1x128x32xbf16, #tpu.memory_space<vmem>>, vector<1x128x32xbf16>
    %96 = vector.shape_cast %95 : vector<1x128x32xbf16> to vector<128x32xbf16>
    %cst_35 = arith.constant dense<0.000000e+00> : vector<8x32xf32>
    %97 = tpu.matmul %94, %96, %cst_35 {dimension_numbers = #tpu.dot_dimension_numbers<[1], [0], [0], [1], [0, 0, 1, 1], [], []>} : vector<8x128xbf16>, vector<128x32xbf16>, vector<8x32xf32> -> vector<8x32xf32>
    %98 = vector.extract_strided_slice %5 {offsets = [6, 0], sizes = [1, 32], strides = [1, 1]} : vector<9x32xf32> to vector<1x32xf32>
    %99 = vector.broadcast %98 : vector<1x32xf32> to vector<8x32xf32>
    %100 = arith.addf %97, %99 : vector<8x32xf32>
    %101 = arith.addf %100, %83 : vector<8x32xf32>
    %102 = vector.extract_strided_slice %5 {offsets = [7, 0], sizes = [1, 32], strides = [1, 1]} : vector<9x32xf32> to vector<1x32xf32>
    %103 = vector.extract_strided_slice %5 {offsets = [8, 0], sizes = [1, 32], strides = [1, 1]} : vector<9x32xf32> to vector<1x32xf32>
    %cst_36 = arith.constant dense<0.000000e+00> : vector<8xf32>
    %104 = vector.multi_reduction <add>, %101, %cst_36 [1] : vector<8x32xf32> to vector<8xf32>
    %105 = vector.shape_cast %104 : vector<8xf32> to vector<8x1xf32>
    %cst_37 = arith.constant 3.200000e+01 : f32
    %106 = vector.broadcast %cst_37 : f32 to vector<8x1xf32>
    %107 = arith.divf %105, %106 : vector<8x1xf32>
    %108 = vector.broadcast %107 : vector<8x1xf32> to vector<8x32xf32>
    %109 = arith.subf %101, %108 : vector<8x32xf32>
    %110 = arith.mulf %109, %109 : vector<8x32xf32>
    %cst_38 = arith.constant dense<0.000000e+00> : vector<8xf32>
    %111 = vector.multi_reduction <add>, %110, %cst_38 [1] : vector<8x32xf32> to vector<8xf32>
    %112 = vector.shape_cast %111 : vector<8xf32> to vector<8x1xf32>
    %cst_39 = arith.constant 3.200000e+01 : f32
    %113 = vector.broadcast %cst_39 : f32 to vector<8x1xf32>
    %114 = arith.divf %112, %113 : vector<8x1xf32>
    %115 = vector.broadcast %107 : vector<8x1xf32> to vector<8x32xf32>
    %116 = arith.subf %101, %115 : vector<8x32xf32>
    %cst_40 = arith.constant 9.99999974E-6 : f32
    %117 = vector.broadcast %cst_40 : f32 to vector<8x1xf32>
    %118 = arith.addf %114, %117 : vector<8x1xf32>
    %119 = math.rsqrt %118 : vector<8x1xf32>
    %120 = vector.broadcast %119 : vector<8x1xf32> to vector<8x32xf32>
    %121 = arith.mulf %116, %120 : vector<8x32xf32>
    %122 = vector.broadcast %102 : vector<1x32xf32> to vector<8x32xf32>
    %123 = arith.mulf %121, %122 : vector<8x32xf32>
    %124 = vector.broadcast %103 : vector<1x32xf32> to vector<8x32xf32>
    %125 = arith.addf %123, %124 : vector<8x32xf32>
    %c0_41 = arith.constant 0 : index
    %c0_42 = arith.constant 0 : index
    %126 = vector.load %arg10[%c0_41, %c0_42] : memref<8x32xf32, #tpu.memory_space<vmem>>, vector<8x32xf32>
    tpu.vector_store %arg10[%c0_41, %c0_42], %125 {strides = array<i32>} : memref<8x32xf32, #tpu.memory_space<vmem>>, vector<8x32xf32>,
    return
  }
  func.func @transform_0(%arg0: i32, %arg1: i32) -> (i32, i32) {
    %c0_i32 = arith.constant 0 : i32
    %c0_i32_0 = arith.constant 0 : i32
    return %arg0, %c0_i32 : i32, i32
  }
  func.func @transform_1(%arg0: i32, %arg1: i32) -> (i32, i32, i32) {
    %c0_i32 = arith.constant 0 : i32
    %c0_i32_0 = arith.constant 0 : i32
    %c0_i32_1 = arith.constant 0 : i32
    return %arg0, %c0_i32, %c0_i32_0 : i32, i32, i32
  }
  func.func @transform_2(%arg0: i32, %arg1: i32) -> (i32, i32, i32) {
    %c0_i32 = arith.constant 0 : i32
    %c0_i32_0 = arith.constant 0 : i32
    %c0_i32_1 = arith.constant 0 : i32
    return %arg1, %c0_i32, %c0_i32_0 : i32, i32, i32
  }
  func.func @transform_3(%arg0: i32, %arg1: i32) -> (i32, i32, i32) {
    %c0_i32 = arith.constant 0 : i32
    %c0_i32_0 = arith.constant 0 : i32
    %c0_i32_1 = arith.constant 0 : i32
    return %arg1, %c0_i32, %c0_i32_0 : i32, i32, i32
  }
  func.func @transform_4(%arg0: i32, %arg1: i32) -> (i32, i32, i32) {
    %c0_i32 = arith.constant 0 : i32
    %c0_i32_0 = arith.constant 0 : i32
    %c0_i32_1 = arith.constant 0 : i32
    return %arg1, %c0_i32, %c0_i32_0 : i32, i32, i32
  }
  func.func @transform_5(%arg0: i32, %arg1: i32) -> (i32, i32, i32) {
    %c0_i32 = arith.constant 0 : i32
    %c0_i32_0 = arith.constant 0 : i32
    %c0_i32_1 = arith.constant 0 : i32
    return %arg1, %c0_i32, %c0_i32_0 : i32, i32, i32
  }
  func.func @transform_6(%arg0: i32, %arg1: i32) -> (i32, i32, i32) {
    %c0_i32 = arith.constant 0 : i32
    %c0_i32_0 = arith.constant 0 : i32
    %c0_i32_1 = arith.constant 0 : i32
    return %arg1, %c0_i32, %c0_i32_0 : i32, i32, i32
  }
  func.func @transform_7(%arg0: i32, %arg1: i32) -> (i32, i32, i32) {
    %c0_i32 = arith.constant 0 : i32
    %c0_i32_0 = arith.constant 0 : i32
    %c0_i32_1 = arith.constant 0 : i32
    return %arg1, %c0_i32, %c0_i32_0 : i32, i32, i32
  }
  func.func @transform_8(%arg0: i32, %arg1: i32) -> (i32, i32) {
    %c0_i32 = arith.constant 0 : i32
    %c0_i32_0 = arith.constant 0 : i32
    return %arg0, %c0_i32 : i32, i32
  }
}

</mosaic_0001>

<llo_original>
// kernel: encoder_forward.1
$region0: #{encoder_forward.1}
  #allocation0 [shape = 'u32[]', space=smem, size = 0x4, offset = 0x4, fixed_abs, tag = 'smem constant byte address 0x4 - core index']
  #allocation1 [shape = 'u32[144,128]{1,0:T(1,128)}', space=vmem, size = 0x12000, scoped, tag = 'internal scratch']
  %s0 = inlined_call_operand.vmem [shape: f32[16,32], index: 0, kind: input, shape index: {}]
  %s1 = inlined_call_operand.vmem [shape: f32[2,1,8], index: 1, kind: input, shape index: {}]
  %s2 = inlined_call_operand.vmem [shape: bf16[2,32,96], index: 2, kind: input, shape index: {}]
  %s3 = inlined_call_operand.vmem [shape: bf16[2,32,32], index: 3, kind: input, shape index: {}]
  %s4 = inlined_call_operand.vmem [shape: bf16[2,32,128], index: 4, kind: input, shape index: {}]
  %s5 = inlined_call_operand.vmem [shape: bf16[2,128,32], index: 5, kind: input, shape index: {}]
  %s6 = inlined_call_operand.vmem [shape: f32[2,9,32], index: 6, kind: input, shape index: {}]
  %s7 = inlined_call_operand.vmem [shape: f32[2,1,128], index: 7, kind: input, shape index: {}]
  %s8 = inlined_call_operand.hbm [shape: f32[16,32], index: 8, kind: output, shape index: {}]
  %s9 = sld [smem:[#allocation0]]
  $region69: #{encoder_forward.1} parent=0
    _
  %s11 = ssub.s32 1, %s9
  %s12 = scalar_select 0, %s11, %s9
  $region1: #{encoder_forward.1} parent=0
    #allocation2 [shape = 'u8[8192]{0}', space=vmem, size = 0x2000, scoped, tag = 'output window, operand 0']
    #allocation3 [shape = 's32[2]{0}', space=sflag, size = 0x8, scoped, tag = 'scoped memory for encoder_forward.1']
    %13 = vsyncpa [#allocation3], 0
    %s14 = scalar_lea.sflag [#allocation3], 1
    %15 = vsyncpa %s14, 0
    loop: start=0, step=1, limit=6
    $region2: #{encoder_forward.1} parent=1 // loop_pre_header
      _
    $region3: #{encoder_forward.1} parent=1 // loop_header
      %s17 = sphi 0, %s21
      %p18 = scmp.ge.s32.totalorder %s17, 6
      %s24 = sphi 0, %s36
      %s25 = sphi 0, %s32
      %s26 = sphi 0, %s24
      %s27 = sphi 0, %s25
      %s28 = sphi 0, %s26
      %s29 = sphi 0, %s27
      %s39 = sphi 0, %s41
      %s42 = sphi 0, %s39
      %s43 = sphi 0, %s42
      %s59 = sphi 0, %s43
      %s65 = sphi 0, %s67
      %s68 = sphi 0, %s65
      %s69 = sphi 0, %s68
      %s85 = sphi 0, %s69
      %s91 = sphi 0, %s93
      %s94 = sphi 0, %s91
      %s95 = sphi 0, %s94
      %s111 = sphi 0, %s95
      %s117 = sphi 0, %s119
      %s120 = sphi 0, %s117
      %s121 = sphi 0, %s120
      %s137 = sphi 0, %s121
      %s143 = sphi 0, %s145
      %s146 = sphi 0, %s143
      %s147 = sphi 0, %s146
      %s163 = sphi 0, %s147
      %s169 = sphi 0, %s171
      %s172 = sphi 0, %s169
      %s173 = sphi 0, %s172
      %s189 = sphi 0, %s173
      %s195 = sphi 0, %s197
      %s198 = sphi 0, %s195
      %s199 = sphi 0, %s198
      %s215 = sphi 0, %s199
      %s221 = sphi 0, %s223
      %s224 = sphi 0, %s221
      %s225 = sphi 0, %s224
      %s241 = sphi 0, %s225
      %s247 = sphi 0, %s249
      %s250 = sphi 0, %s247
      %s251 = sphi 0, %s250
      %s267 = sphi 0, %s251
    $region4: #{encoder_forward.1} parent=1 // loop_header_branch
      %20 = sbr.rel (%p18) target = $region8
    $region5: #{encoder_forward.1} parent=1 // loop_body
      %s22 = ssub.s32 %s17, 1
      %s23 = ssub.s32 %s17, 2
      %s30 = sadd.s32 1, %s25
      %p31 = scmp.ge.s32.totalorder %s30, 2
      %s32 = scalar_select %p31, 0, %s30
      %s33 = sadd.s32 1, %s24
      %s34 = scalar_select %p31, %s33, %s24
      %p35 = scmp.ge.s32.totalorder %s34, 2
      %s36 = scalar_select %p35, 0, %s34
      %s37 = ssub.s32 %s24, %s36
      %p38 = scmp.eq.s32.totalorder %s37, 0
      %s40 = sadd.s32 %s39, 1
      %s41 = scalar_select %p38, %s39, %s40
      %p44 = pneg %p38
      %p45 = scmp.eq.s32.totalorder %s17, 3
      %p46 = por %p44, %p45
      %p47 = scmp.ne.s32.totalorder %s39, %s42
      %p48 = scmp.eq.s32.totalorder %s17, 0
      %p49 = por %p47, %p48
      %p50 = scmp.ne.s32.totalorder %s39, %s42
      %p51 = scmp.eq.s32.totalorder %s22, 3
      %p52 = por %p50, %p51
      %p53 = scmp.ne.s32.totalorder %s42, %s43
      %p54 = scmp.eq.s32.totalorder %s22, 0
      %p55 = por %p53, %p54
      %p56 = scmp.ne.s32.totalorder %s42, %s43
      %p57 = scmp.eq.s32.totalorder %s23, 3
      %p58 = por %p56, %p57
      %p60 = scmp.ne.s32.totalorder %s43, %s59
      %p61 = scmp.eq.s32.totalorder %s23, 0
      %p62 = por %p60, %p61
      %s63 = ssub.s32 %s24, %s36
      %p64 = scmp.eq.s32.totalorder %s63, 0
      %s66 = sadd.s32 %s65, 1
      %s67 = scalar_select %p64, %s65, %s66
      %p70 = pneg %p64
      %p71 = scmp.eq.s32.totalorder %s17, 3
      %p72 = por %p70, %p71
      %p73 = scmp.ne.s32.totalorder %s65, %s68
      %p74 = scmp.eq.s32.totalorder %s17, 0
      %p75 = por %p73, %p74
      %p76 = scmp.ne.s32.totalorder %s65, %s68
      %p77 = scmp.eq.s32.totalorder %s22, 3
      %p78 = por %p76, %p77
      %p79 = scmp.ne.s32.totalorder %s68, %s69
      %p80 = scmp.eq.s32.totalorder %s22, 0
      %p81 = por %p79, %p80
      %p82 = scmp.ne.s32.totalorder %s68, %s69
      %p83 = scmp.eq.s32.totalorder %s23, 3
      %p84 = por %p82, %p83
      %p86 = scmp.ne.s32.totalorder %s69, %s85
      %p87 = scmp.eq.s32.totalorder %s23, 0
      %p88 = por %p86, %p87
      %s89 = ssub.s32 %s25, %s32
      %p90 = scmp.eq.s32.totalorder %s89, 0
      %s92 = sadd.s32 %s91, 1
      %s93 = scalar_select %p90, %s91, %s92
      %p96 = pneg %p90
      %p97 = scmp.eq.s32.totalorder %s17, 3
      %p98 = por %p96, %p97
      %p99 = scmp.ne.s32.totalorder %s91, %s94
      %p100 = scmp.eq.s32.totalorder %s17, 0
      %p101 = por %p99, %p100
      %p102 = scmp.ne.s32.totalorder %s91, %s94
      %p103 = scmp.eq.s32.totalorder %s22, 3
      %p104 = por %p102, %p103
      %p105 = scmp.ne.s32.totalorder %s94, %s95
      %p106 = scmp.eq.s32.totalorder %s22, 0
      %p107 = por %p105, %p106
      %p108 = scmp.ne.s32.totalorder %s94, %s95
      %p109 = scmp.eq.s32.totalorder %s23, 3
      %p110 = por %p108, %p109
      %p112 = scmp.ne.s32.totalorder %s95, %s111
      %p113 = scmp.eq.s32.totalorder %s23, 0
      %p114 = por %p112, %p113
      %s115 = ssub.s32 %s25, %s32
      %p116 = scmp.eq.s32.totalorder %s115, 0
      %s118 = sadd.s32 %s117, 1
      %s119 = scalar_select %p116, %s117, %s118
      %p122 = pneg %p116
      %p123 = scmp.eq.s32.totalorder %s17, 3
      %p124 = por %p122, %p123
      %p125 = scmp.ne.s32.totalorder %s117, %s120
      %p126 = scmp.eq.s32.totalorder %s17, 0
      %p127 = por %p125, %p126
      %p128 = scmp.ne.s32.totalorder %s117, %s120
      %p129 = scmp.eq.s32.totalorder %s22, 3
      %p130 = por %p128, %p129
      %p131 = scmp.ne.s32.totalorder %s120, %s121
      %p132 = scmp.eq.s32.totalorder %s22, 0
      %p133 = por %p131, %p132
      %p134 = scmp.ne.s32.totalorder %s120, %s121
      %p135 = scmp.eq.s32.totalorder %s23, 3
      %p136 = por %p134, %p135
      %p138 = scmp.ne.s32.totalorder %s121, %s137
      %p139 = scmp.eq.s32.totalorder %s23, 0
      %p140 = por %p138, %p139
      %s141 = ssub.s32 %s25, %s32
      %p142 = scmp.eq.s32.totalorder %s141, 0
      %s144 = sadd.s32 %s143, 1
      %s145 = scalar_select %p142, %s143, %s144
      %p148 = pneg %p142
      %p149 = scmp.eq.s32.totalorder %s17, 3
      %p150 = por %p148, %p149
      %p151 = scmp.ne.s32.totalorder %s143, %s146
      %p152 = scmp.eq.s32.totalorder %s17, 0
      %p153 = por %p151, %p152
      %p154 = scmp.ne.s32.totalorder %s143, %s146
      %p155 = scmp.eq.s32.totalorder %s22, 3
      %p156 = por %p154, %p155
      %p157 = scmp.ne.s32.totalorder %s146, %s147
      %p158 = scmp.eq.s32.totalorder %s22, 0
      %p159 = por %p157, %p158
      %p160 = scmp.ne.s32.totalorder %s146, %s147
      %p161 = scmp.eq.s32.totalorder %s23, 3
      %p162 = por %p160, %p161
      %p164 = scmp.ne.s32.totalorder %s147, %s163
      %p165 = scmp.eq.s32.totalorder %s23, 0
      %p166 = por %p164, %p165
      %s167 = ssub.s32 %s25, %s32
      %p168 = scmp.eq.s32.totalorder %s167, 0
      %s170 = sadd.s32 %s169, 1
      %s171 = scalar_select %p168, %s169, %s170
      %p174 = pneg %p168
      %p175 = scmp.eq.s32.totalorder %s17, 3
      %p176 = por %p174, %p175
      %p177 = scmp.ne.s32.totalorder %s169, %s172
      %p178 = scmp.eq.s32.totalorder %s17, 0
      %p179 = por %p177, %p178
      %p180 = scmp.ne.s32.totalorder %s169, %s172
      %p181 = scmp.eq.s32.totalorder %s22, 3
      %p182 = por %p180, %p181
      %p183 = scmp.ne.s32.totalorder %s172, %s173
      %p184 = scmp.eq.s32.totalorder %s22, 0
      %p185 = por %p183, %p184
      %p186 = scmp.ne.s32.totalorder %s172, %s173
      %p187 = scmp.eq.s32.totalorder %s23, 3
      %p188 = por %p186, %p187
      %p190 = scmp.ne.s32.totalorder %s173, %s189
      %p191 = scmp.eq.s32.totalorder %s23, 0
      %p192 = por %p190, %p191
      %s193 = ssub.s32 %s25, %s32
      %p194 = scmp.eq.s32.totalorder %s193, 0
      %s196 = sadd.s32 %s195, 1
      %s197 = scalar_select %p194, %s195, %s196
      %p200 = pneg %p194
      %p201 = scmp.eq.s32.totalorder %s17, 3
      %p202 = por %p200, %p201
      %p203 = scmp.ne.s32.totalorder %s195, %s198
      %p204 = scmp.eq.s32.totalorder %s17, 0
      %p205 = por %p203, %p204
      %p206 = scmp.ne.s32.totalorder %s195, %s198
      %p207 = scmp.eq.s32.totalorder %s22, 3
      %p208 = por %p206, %p207
      %p209 = scmp.ne.s32.totalorder %s198, %s199
      %p210 = scmp.eq.s32.totalorder %s22, 0
      %p211 = por %p209, %p210
      %p212 = scmp.ne.s32.totalorder %s198, %s199
      %p213 = scmp.eq.s32.totalorder %s23, 3
      %p214 = por %p212, %p213
      %p216 = scmp.ne.s32.totalorder %s199, %s215
      %p217 = scmp.eq.s32.totalorder %s23, 0
      %p218 = por %p216, %p217
      %s219 = ssub.s32 %s25, %s32
      %p220 = scmp.eq.s32.totalorder %s219, 0
      %s222 = sadd.s32 %s221, 1
      %s223 = scalar_select %p220, %s221, %s222
      %p226 = pneg %p220
      %p227 = scmp.eq.s32.totalorder %s17, 3
      %p228 = por %p226, %p227
      %p229 = scmp.ne.s32.totalorder %s221, %s224
      %p230 = scmp.eq.s32.totalorder %s17, 0
      %p231 = por %p229, %p230
      %p232 = scmp.ne.s32.totalorder %s221, %s224
      %p233 = scmp.eq.s32.totalorder %s22, 3
      %p234 = por %p232, %p233
      %p235 = scmp.ne.s32.totalorder %s224, %s225
      %p236 = scmp.eq.s32.totalorder %s22, 0
      %p237 = por %p235, %p236
      %p238 = scmp.ne.s32.totalorder %s224, %s225
      %p239 = scmp.eq.s32.totalorder %s23, 3
      %p240 = por %p238, %p239
      %p242 = scmp.ne.s32.totalorder %s225, %s241
      %p243 = scmp.eq.s32.totalorder %s23, 0
      %p244 = por %p242, %p243
      %s245 = ssub.s32 %s24, %s36
      %p246 = scmp.eq.s32.totalorder %s245, 0
      %s248 = sadd.s32 %s247, 1
      %s249 = scalar_select %p246, %s247, %s248
      %p252 = pneg %p246
      %p253 = scmp.eq.s32.totalorder %s17, 3
      %p254 = por %p252, %p253
      %p255 = scmp.ne.s32.totalorder %s247, %s250
      %p256 = scmp.eq.s32.totalorder %s17, 0
      %p257 = por %p255, %p256
      %p258 = scmp.ne.s32.totalorder %s247, %s250
      %p259 = scmp.eq.s32.totalorder %s22, 3
      %p260 = por %p258, %p259
      %p261 = scmp.ne.s32.totalorder %s250, %s251
      %p262 = scmp.eq.s32.totalorder %s22, 0
      %p263 = por %p261, %p262
      %p264 = scmp.ne.s32.totalorder %s250, %s251
      %p265 = scmp.eq.s32.totalorder %s23, 3
      %p266 = por %p264, %p265
      %p268 = scmp.ne.s32.totalorder %s251, %s267
      %p269 = scmp.eq.s32.totalorder %s23, 0
      %p270 = por %p268, %p269
      %p271 = scmp.le.s32.totalorder 1, %s17
      %p272 = scmp.lt.s32.totalorder %s17, 5
      %p273 = pnand %p271, %p272
      %p274 = pneg %p273
      // Predicated region
      $region9: #{encoder_forward.1} parent=5 // pred_check
        _
      $region10: #{encoder_forward.1} parent=5 // pred_check_branch
        %276 = sbr.rel (%p273) target = $region12
      $region11: #{encoder_forward.1} parent=5 // pred_region
        %s277 = ssub.s32 %s17, 1
      $region12: #{encoder_forward.1} parent=5 // pred_fallthru
        _
      %p278 = scmp.lt.s32.totalorder %s17, 4
      // Predicated region
      $region13: #{encoder_forward.1} parent=5 // pred_check
        %p279 = pneg %p278
      $region14: #{encoder_forward.1} parent=5 // pred_check_branch
        %281 = sbr.rel (%p279) target = $region16
      $region15: #{encoder_forward.1} parent=5 // pred_region
        // Predicated region
        $region17: #{encoder_forward.1} parent=15 // pred_check
          %p282 = pneg %p49
        $region18: #{encoder_forward.1} parent=15 // pred_check_branch
          %284 = sbr.rel (%p282) target = $region20
        $region19: #{encoder_forward.1} parent=15 // pred_region
          %p285 = scmp.lt.s32.totalorder %s24, 1
          %s286 = scalar_select %p285, %s24, 1
          %s287 = smul.addr %s286, 8
          %s288 = scalar_lea.vmem %s0, %s287
        $region20: #{encoder_forward.1} parent=15 // pred_fallthru
          _
        // Predicated region
        $region21: #{encoder_forward.1} parent=15 // pred_check
          %p289 = pneg %p75
        $region22: #{encoder_forward.1} parent=15 // pred_check_branch
          %291 = sbr.rel (%p289) target = $region24
        $region23: #{encoder_forward.1} parent=15 // pred_region
          %p292 = scmp.lt.s32.totalorder %s24, 1
          %s293 = scalar_select %p292, %s24, 1
          %s294 = scalar_lea.vmem %s1, %s293
        $region24: #{encoder_forward.1} parent=15 // pred_fallthru
          _
        // Predicated region
        $region25: #{encoder_forward.1} parent=15 // pred_check
          %p295 = pneg %p101
        $region26: #{encoder_forward.1} parent=15 // pred_check_branch
          %297 = sbr.rel (%p295) target = $region28
        $region27: #{encoder_forward.1} parent=15 // pred_region
          %p298 = scmp.lt.s32.totalorder %s25, 1
          %s299 = scalar_select %p298, %s25, 1
          %s300 = smul.addr %s299, 4
          %s301 = smul.addr %s300, 4
          %s302 = scalar_lea.vmem %s2, %s301
        $region28: #{encoder_forward.1} parent=15 // pred_fallthru
          _
        // Predicated region
        $region29: #{encoder_forward.1} parent=15 // pred_check
          %p303 = pneg %p127
        $region30: #{encoder_forward.1} parent=15 // pred_check_branch
          %305 = sbr.rel (%p303) target = $region32
        $region31: #{encoder_forward.1} parent=15 // pred_region
          %p306 = scmp.lt.s32.totalorder %s25, 1
          %s307 = scalar_select %p306, %s25, 1
          %s308 = smul.addr %s307, 4
          %s309 = smul.addr %s308, 4
          %s310 = scalar_lea.vmem %s3, %s309
        $region32: #{encoder_forward.1} parent=15 // pred_fallthru
          _
        // Predicated region
        $region33: #{encoder_forward.1} parent=15 // pred_check
          %p311 = pneg %p153
        $region34: #{encoder_forward.1} parent=15 // pred_check_branch
          %313 = sbr.rel (%p311) target = $region36
        $region35: #{encoder_forward.1} parent=15 // pred_region
          %p314 = scmp.lt.s32.totalorder %s25, 1
          %s315 = scalar_select %p314, %s25, 1
          %s316 = smul.addr %s315, 4
          %s317 = smul.addr %s316, 4
          %s318 = scalar_lea.vmem %s4, %s317
        $region36: #{encoder_forward.1} parent=15 // pred_fallthru
          _
        // Predicated region
        $region37: #{encoder_forward.1} parent=15 // pred_check
          %p319 = pneg %p179
        $region38: #{encoder_forward.1} parent=15 // pred_check_branch
          %321 = sbr.rel (%p319) target = $region40
        $region39: #{encoder_forward.1} parent=15 // pred_region
          %p322 = scmp.lt.s32.totalorder %s25, 1
          %s323 = scalar_select %p322, %s25, 1
          %s324 = smul.addr %s323, 16
          %s325 = smul.addr %s324, 4
          %s326 = scalar_lea.vmem %s5, %s325
        $region40: #{encoder_forward.1} parent=15 // pred_fallthru
          _
        // Predicated region
        $region41: #{encoder_forward.1} parent=15 // pred_check
          %p327 = pneg %p205
        $region42: #{encoder_forward.1} parent=15 // pred_check_branch
          %329 = sbr.rel (%p327) target = $region44
        $region43: #{encoder_forward.1} parent=15 // pred_region
          %p330 = scmp.lt.s32.totalorder %s25, 1
          %s331 = scalar_select %p330, %s25, 1
          %s332 = smul.addr %s331, 2
          %s333 = smul.addr %s332, 8
          %s334 = scalar_lea.vmem %s6, %s333
        $region44: #{encoder_forward.1} parent=15 // pred_fallthru
          _
        // Predicated region
        $region45: #{encoder_forward.1} parent=15 // pred_check
          %p335 = pneg %p231
        $region46: #{encoder_forward.1} parent=15 // pred_check_branch
          %337 = sbr.rel (%p335) target = $region48
        $region47: #{encoder_forward.1} parent=15 // pred_region
          %p338 = scmp.lt.s32.totalorder %s25, 1
          %s339 = scalar_select %p338, %s25, 1
          %s340 = scalar_lea.vmem %s7, %s339
        $region48: #{encoder_forward.1} parent=15 // pred_fallthru
          _
      $region16: #{encoder_forward.1} parent=5 // pred_fallthru
        _
      %p341 = scmp.le.s32.totalorder 1, %s17
      %p342 = scmp.lt.s32.totalorder %s17, 5
      %p343 = pnand %p341, %p342
      %p344 = pneg %p343
      // Predicated region
      $region49: #{encoder_forward.1} parent=5 // pred_check
        _
      $region50: #{encoder_forward.1} parent=5 // pred_check_branch
        %346 = sbr.rel (%p343) target = $region52
      $region51: #{encoder_forward.1} parent=5 // pred_region
        %s347 = ssub.s32 %s17, 1
        %p348 = scmp.lt.s32.totalorder %s26, 1
        %s349 = scalar_select %p348, %s26, 1
        %s350 = smul.addr %s349, 8
        %s351 = scalar_lea.vmem %s0, %s350
        %p352 = pneg %p55
        %p353 = pneg %p52
        %p354 = scmp.lt.s32.totalorder %s26, 1
        %s355 = scalar_select %p354, %s26, 1
        %s356 = scalar_lea.vmem %s1, %s355
        %p357 = pneg %p81
        %p358 = pneg %p78
        %p359 = scmp.lt.s32.totalorder %s27, 1
        %s360 = scalar_select %p359, %s27, 1
        %s361 = smul.addr %s360, 4
        %s362 = smul.addr %s361, 4
        %s363 = scalar_lea.vmem %s2, %s362
        %p364 = pneg %p107
        %p365 = pneg %p104
        %p366 = scmp.lt.s32.totalorder %s27, 1
        %s367 = scalar_select %p366, %s27, 1
        %s368 = smul.addr %s367, 4
        %s369 = smul.addr %s368, 4
        %s370 = scalar_lea.vmem %s3, %s369
        %p371 = pneg %p133
        %p372 = pneg %p130
        %p373 = scmp.lt.s32.totalorder %s27, 1
        %s374 = scalar_select %p373, %s27, 1
        %s375 = smul.addr %s374, 4
        %s376 = smul.addr %s375, 4
        %s377 = scalar_lea.vmem %s4, %s376
        %p378 = pneg %p159
        %p379 = pneg %p156
        %p380 = scmp.lt.s32.totalorder %s27, 1
        %s381 = scalar_select %p380, %s27, 1
        %s382 = smul.addr %s381, 16
        %s383 = smul.addr %s382, 4
        %s384 = scalar_lea.vmem %s5, %s383
        %p385 = pneg %p185
        %p386 = pneg %p182
        %p387 = scmp.lt.s32.totalorder %s27, 1
        %s388 = scalar_select %p387, %s27, 1
        %s389 = smul.addr %s388, 2
        %s390 = smul.addr %s389, 8
        %s391 = scalar_lea.vmem %s6, %s390
        %p392 = pneg %p211
        %p393 = pneg %p208
        %p394 = scmp.lt.s32.totalorder %s27, 1
        %s395 = scalar_select %p394, %s27, 1
        %s396 = scalar_lea.vmem %s7, %s395
        %p397 = pneg %p237
        %p398 = pneg %p234
        %p399 = pneg %p263
        %p400 = pneg %p260
        %s401 = sand.u32 %s250, 1
        %s402 = scalar_lea.sflag [#allocation3], %s401
        %s403 = sand.u32 %s250, 1
        %s404 = smul.addr %s403, 8
        %s405 = scalar_lea.vmem [#allocation2], %s404
        %p406 = scmp.lt.s32.totalorder %s26, 1
        %s407 = scalar_select %p406, %s26, 1
        %s408 = smul.addr %s407, 8
        %s409 = scalar_lea.vmem %s0, %s408
        %p410 = scmp.lt.s32.totalorder %s26, 1
        %s411 = scalar_select %p410, %s26, 1
        %s412 = scalar_lea.vmem %s1, %s411
        %p413 = scmp.lt.s32.totalorder %s27, 1
        %s414 = scalar_select %p413, %s27, 1
        %s415 = smul.addr %s414, 4
        %s416 = smul.addr %s415, 4
        %s417 = scalar_lea.vmem %s2, %s416
        %p418 = scmp.lt.s32.totalorder %s27, 1
        %s419 = scalar_select %p418, %s27, 1
        %s420 = smul.addr %s419, 4
        %s421 = smul.addr %s420, 4
        %s422 = scalar_lea.vmem %s3, %s421
        %p423 = scmp.lt.s32.totalorder %s27, 1
        %s424 = scalar_select %p423, %s27, 1
        %s425 = smul.addr %s424, 4
        %s426 = smul.addr %s425, 4
        %s427 = scalar_lea.vmem %s4, %s426
        %p428 = scmp.lt.s32.totalorder %s27, 1
        %s429 = scalar_select %p428, %s27, 1
        %s430 = smul.addr %s429, 16
        %s431 = smul.addr %s430, 4
        %s432 = scalar_lea.vmem %s5, %s431
        %p433 = scmp.lt.s32.totalorder %s27, 1
        %s434 = scalar_select %p433, %s27, 1
        %s435 = smul.addr %s434, 2
        %s436 = smul.addr %s435, 8
        %s437 = scalar_lea.vmem %s6, %s436
        %p438 = scmp.lt.s32.totalorder %s27, 1
        %s439 = scalar_select %p438, %s27, 1
        %s440 = scalar_lea.vmem %s7, %s439
        %p442 = scmp.eq.s32.totalorder %s27, 0
        // Predicated region
        $region53: #{encoder_forward.1} parent=51 // pred_check
          %p443 = pneg %p442
        $region54: #{encoder_forward.1} parent=51 // pred_check_branch
          %445 = sbr.rel (%p443) target = $region56
        $region55: #{encoder_forward.1} parent=51 // pred_region
          %v446 = vld [vmem:[%s409] sm:$0xff]
          %vm447 = vcmask 261120
          %448 = vst.msk [vmem:[%s405] sm:$0xff] %vm447, %v446
        $region56: #{encoder_forward.1} parent=51 // pred_fallthru
          _
        %v449 = vld [vmem:[%s405] sm:$0xff]
        %v450 = vld [vmem:[%s437] sm:$0xff]
        %v451 = vld [vmem:[%s437 + $0x8] sm:$0x1]
        %v452 = vpack.c.bf16 %v449, %v449
        %v453 = vld [vmem:[%s417] sm:$0xf]
        %v454 = vld [vmem:[%s417 + $0x4] sm:$0xf]
        %v455 = vld [vmem:[%s417 + $0x8] sm:$0xf]
        %v456 = vld [vmem:[%s417 + $0xc] sm:$0xf]
        %v461 = vunpack.c.l.b16 %v453
        %v462 = vunpack.c.l.b16 %v454
        %v463 = vunpack.c.l.b16 %v455
        %v464 = vunpack.c.l.b16 %v456
        %v465 = vpack.c.b16 %v462, %v461
        %v466 = vpack.c.b16 %v464, %v463
        %vm469 = vcmask 261120
        %v471 = vsel %vm469, %v452, 0
        %473 = vmatprep.subr.bf16.mxu0 0
        %474 = vmatpush1.bf16.msra.mxu0 %v465
        %475 = vmatprep.subr.bf16.mxu0 0
        %476 = vmatpush1.bf16.msra.mxu0 %v466
        %477 = vmatprep.subr.bf16.mxu0 0
        %478 = vmatpush1.bf16.msra.mxu0 0
        %479 = vmatprep.subr.bf16.mxu0 0
        %480 = vmatpush1.bf16.msra.mxu0 0
        %481 = vmatprep.subr.bf16.mxu0 0
        %482 = vmatpush1.bf16.msra.mxu0 0
        %483 = vmatprep.subr.bf16.mxu0 0
        %484 = vmatpush1.bf16.msra.mxu0 0
        %485 = vmatprep.subr.bf16.mxu0 0
        %486 = vmatpush1.bf16.msra.mxu0 0
        %487 = vmatprep.subr.bf16.mxu0 0
        %488 = vmatpush1.bf16.msra.mxu0 0
        %489 = vmatprep.subr.bf16.mxu0 0
        %490 = vmatpush1.bf16.msra.mxu0 0
        %491 = vmatprep.subr.bf16.mxu0 0
        %492 = vmatpush1.bf16.msra.mxu0 0
        %493 = vmatprep.subr.bf16.mxu0 0
        %494 = vmatpush1.bf16.msra.mxu0 0
        %495 = vmatprep.subr.bf16.mxu0 0
        %496 = vmatpush1.bf16.msra.mxu0 0
        %497 = vmatprep.subr.bf16.mxu0 0
        %498 = vmatpush1.bf16.msra.mxu0 0
        %499 = vmatprep.subr.bf16.mxu0 0
        %500 = vmatpush1.bf16.msra.mxu0 0
        %501 = vmatprep.subr.bf16.mxu0 0
        %502 = vmatpush1.bf16.msra.mxu0 0
        %503 = vmatprep.subr.bf16.mxu0 0
        %504 = vmatpush1.bf16.msra.mxu0 0
        %505 = vmatprep.mubr.bf16.mxu0 0
        %506 = vmatmul.mubr.bf16.gmra.mrb[0].mxu0 %v471
        %v507 = vpop.f32.mrb[0].mxu0
        %v508 = vadd.f32 0.0, %v507
        %v509 = vpop.f32.mrb[0].mxu0
        %v510 = vpop.f32.mrb[0].mxu0
        %v511 = vpop.f32.mrb[0].mxu0
        %512 = vdwg.mxu0
        %v513 = vlaneseq
        %v514 = vshrl.u32 %v513, 7
        %v515 = vsub.s32 0, %v514
        %v516 = vrot.slane %v450, %v515
        %v517 = vadd.f32 %v508, %v516
        %v518 = vpack.c.bf16 %v517, %v517
        %520 = vrot.lane.b32.xlu0 %v518, 120
        %v521 = vpop.permute.xlu0 %520
        %522 = vrot.lane.b32.xlu0 %v518, 112
        %v523 = vpop.permute.xlu0 %522
        %524 = vrot.lane.b32.xlu0 %v518, 104
        %v525 = vpop.permute.xlu0 %524
        %v527 = vunpack.c.l.s4 1983009808
        %v528 = vunpack.c.0.s8 %v527
        %v529 = vlaneseq
        %v530 = vshrl.u32 %v529, 7
        %v531 = vsub.s32 %v528, %v530
        %v532 = vrot.slane %v518, %v531
        %v535 = vunpack.c.l.s4 1983009808
        %v536 = vunpack.c.0.s8 %v535
        %v537 = vlaneseq
        %v538 = vshrl.u32 %v537, 7
        %v539 = vsub.s32 %v536, %v538
        %v540 = vrot.slane %v523, %v539
        %v541 = vcombine.low %v532, %v540
        %v542 = vcombine.high %v532, %v540
        %v544 = vunpack.c.l.s4 1934713408
        %v545 = vunpack.c.0.s8 %v544
        %v546 = vlaneseq
        %v547 = vshrl.u32 %v546, 7
        %v548 = vsub.s32 %v545, %v547
        %v549 = vrot.slane %v541, %v548
        %v551 = vunpack.c.l.s4 1934713408
        %v552 = vunpack.c.0.s8 %v551
        %v553 = vlaneseq
        %v554 = vshrl.u32 %v553, 7
        %v555 = vsub.s32 %v552, %v554
        %v556 = vrot.slane %v542, %v555
        %v557 = vcombine.high %v549, 0
        %v558 = vcombine.high %v556, 0
        %v561 = vunpack.c.l.s4 1983009808
        %v562 = vunpack.c.0.s8 %v561
        %v563 = vlaneseq
        %v564 = vshrl.u32 %v563, 7
        %v565 = vsub.s32 %v562, %v564
        %v566 = vrot.slane %v521, %v565
        %v569 = vunpack.c.l.s4 1983009808
        %v570 = vunpack.c.0.s8 %v569
        %v571 = vlaneseq
        %v572 = vshrl.u32 %v571, 7
        %v573 = vsub.s32 %v570, %v572
        %v574 = vrot.slane %v525, %v573
        %v575 = vcombine.low %v566, %v574
        %v576 = vcombine.high %v566, %v574
        %v578 = vunpack.c.l.s4 1934713408
        %v579 = vunpack.c.0.s8 %v578
        %v580 = vlaneseq
        %v581 = vshrl.u32 %v580, 7
        %v582 = vsub.s32 %v579, %v581
        %v583 = vrot.slane %v575, %v582
        %v585 = vunpack.c.l.s4 1934713408
        %v586 = vunpack.c.0.s8 %v585
        %v587 = vlaneseq
        %v588 = vshrl.u32 %v587, 7
        %v589 = vsub.s32 %v586, %v588
        %v590 = vrot.slane %v576, %v589
        %v591 = vcombine.high %v583, 0
        %v592 = vcombine.high %v590, 0
        %v595 = vpack.i.b16 %v583, %v549
        %v597 = vshrl.u32 %v549, 16
        %v598 = vshrl.u32 %v583, 16
        %v599 = vpack.i.b16 %v598, %v597
        %v603 = vpack.i.b16 %v591, %v557
        %v605 = vshrl.u32 %v557, 16
        %v606 = vshrl.u32 %v591, 16
        %v607 = vpack.i.b16 %v606, %v605
        %v611 = vpack.i.b16 %v590, %v556
        %v613 = vshrl.u32 %v556, 16
        %v614 = vshrl.u32 %v590, 16
        %v615 = vpack.i.b16 %v614, %v613
        %v619 = vpack.i.b16 %v592, %v558
        %v621 = vshrl.u32 %v558, 16
        %v622 = vshrl.u32 %v592, 16
        %v623 = vpack.i.b16 %v622, %v621
        %v625 = vcombine.low %v595, %v611
        %v627 = vunpack.c.l.s4 1983009808
        %v628 = vunpack.c.0.s8 %v627
        %v629 = vlaneseq
        %v630 = vshrl.u32 %v629, 7
        %v631 = vsub.s32 %v628, %v630
        %v632 = vrot.slane %v625, %v631
        %v633 = vcombine.low %v603, %v619
        %v635 = vunpack.c.l.s4 1983009808
        %v636 = vunpack.c.0.s8 %v635
        %v637 = vlaneseq
        %v638 = vshrl.u32 %v637, 7
        %v639 = vsub.s32 %v636, %v638
        %v640 = vrot.slane %v633, %v639
        %v641 = vcombine.low %v632, %v640
        %v643 = vunpack.c.l.s4 1934713408
        %v644 = vunpack.c.0.s8 %v643
        %v645 = vlaneseq
        %v646 = vshrl.u32 %v645, 7
        %v647 = vsub.s32 %v644, %v646
        %v648 = vrot.slane %v641, %v647
        %v649 = vcombine.high %v648, 0
        %v650 = vcombine.low %v599, %v615
        %v652 = vunpack.c.l.s4 1983009808
        %v653 = vunpack.c.0.s8 %v652
        %v654 = vlaneseq
        %v655 = vshrl.u32 %v654, 7
        %v656 = vsub.s32 %v653, %v655
        %v657 = vrot.slane %v650, %v656
        %v658 = vcombine.low %v607, %v623
        %v660 = vunpack.c.l.s4 1983009808
        %v661 = vunpack.c.0.s8 %v660
        %v662 = vlaneseq
        %v663 = vshrl.u32 %v662, 7
        %v664 = vsub.s32 %v661, %v663
        %v665 = vrot.slane %v658, %v664
        %v666 = vcombine.low %v657, %v665
        %v668 = vunpack.c.l.s4 1934713408
        %v669 = vunpack.c.0.s8 %v668
        %v670 = vlaneseq
        %v671 = vshrl.u32 %v670, 7
        %v672 = vsub.s32 %v669, %v671
        %v673 = vrot.slane %v666, %v672
        %v674 = vcombine.high %v673, 0
        %v677 = vpack.i.b16 %v673, %v648
        %v678 = vshrl.u32 %v648, 16
        %v679 = vshrl.u32 %v673, 16
        %v680 = vpack.i.b16 %v679, %v678
        %v683 = vpack.i.b16 %v674, %v649
        %v684 = vshrl.u32 %v649, 16
        %v685 = vshrl.u32 %v674, 16
        %v686 = vpack.i.b16 %v685, %v684
        %v687 = vlaneseq
        %v688 = vshrl.u32 %v687, 7
        %v689 = vsub.s32 1, %v688
        %v690 = vrot.slane %v450, %v689
        %692 = vrot.lane.b32.xlu0 %v690, 32
        %v693 = vpop.permute.xlu0 %692
        %v695 = vadd.f32 %v508, %v693
        %v696 = vpack.c.bf16 %v695, %v695
        %698 = vrot.lane.b32.xlu0 %v696, 120
        %v699 = vpop.permute.xlu0 %698
        %700 = vrot.lane.b32.xlu0 %v696, 112
        %v701 = vpop.permute.xlu0 %700
        %702 = vrot.lane.b32.xlu0 %v696, 104
        %v703 = vpop.permute.xlu0 %702
        %704 = vrot.lane.b32.xlu0 %v696, 96
        %v705 = vpop.permute.xlu0 %704
        %706 = vrot.lane.b32.xlu0 %v699, 96
        %v707 = vpop.permute.xlu0 %706
        %708 = vrot.lane.b32.xlu0 %v701, 96
        %v709 = vpop.permute.xlu0 %708
        %710 = vrot.lane.b32.xlu0 %v703, 96
        %v711 = vpop.permute.xlu0 %710
        %v714 = vunpack.c.l.s4 1983009808
        %v715 = vunpack.c.0.s8 %v714
        %v716 = vlaneseq
        %v717 = vshrl.u32 %v716, 7
        %v718 = vsub.s32 %v715, %v717
        %v719 = vrot.slane %v705, %v718
        %v722 = vunpack.c.l.s4 1983009808
        %v723 = vunpack.c.0.s8 %v722
        %v724 = vlaneseq
        %v725 = vshrl.u32 %v724, 7
        %v726 = vsub.s32 %v723, %v725
        %v727 = vrot.slane %v709, %v726
        %v728 = vcombine.low %v719, %v727
        %v729 = vcombine.high %v719, %v727
        %v731 = vunpack.c.l.s4 1934713408
        %v732 = vunpack.c.0.s8 %v731
        %v733 = vlaneseq
        %v734 = vshrl.u32 %v733, 7
        %v735 = vsub.s32 %v732, %v734
        %v736 = vrot.slane %v728, %v735
        %v738 = vunpack.c.l.s4 1934713408
        %v739 = vunpack.c.0.s8 %v738
        %v740 = vlaneseq
        %v741 = vshrl.u32 %v740, 7
        %v742 = vsub.s32 %v739, %v741
        %v743 = vrot.slane %v729, %v742
        %v744 = vcombine.high %v736, 0
        %v745 = vcombine.high %v743, 0
        %v748 = vunpack.c.l.s4 1983009808
        %v749 = vunpack.c.0.s8 %v748
        %v750 = vlaneseq
        %v751 = vshrl.u32 %v750, 7
        %v752 = vsub.s32 %v749, %v751
        %v753 = vrot.slane %v707, %v752
        %v756 = vunpack.c.l.s4 1983009808
        %v757 = vunpack.c.0.s8 %v756
        %v758 = vlaneseq
        %v759 = vshrl.u32 %v758, 7
        %v760 = vsub.s32 %v757, %v759
        %v761 = vrot.slane %v711, %v760
        %v762 = vcombine.low %v753, %v761
        %v763 = vcombine.high %v753, %v761
        %v765 = vunpack.c.l.s4 1934713408
        %v766 = vunpack.c.0.s8 %v765
        %v767 = vlaneseq
        %v768 = vshrl.u32 %v767, 7
        %v769 = vsub.s32 %v766, %v768
        %v770 = vrot.slane %v762, %v769
        %v772 = vunpack.c.l.s4 1934713408
        %v773 = vunpack.c.0.s8 %v772
        %v774 = vlaneseq
        %v775 = vshrl.u32 %v774, 7
        %v776 = vsub.s32 %v773, %v775
        %v777 = vrot.slane %v763, %v776
        %v778 = vcombine.high %v770, 0
        %v779 = vcombine.high %v777, 0
        %v782 = vpack.i.b16 %v770, %v736
        %v784 = vshrl.u32 %v736, 16
        %v785 = vshrl.u32 %v770, 16
        %v786 = vpack.i.b16 %v785, %v784
        %v790 = vpack.i.b16 %v778, %v744
        %v792 = vshrl.u32 %v744, 16
        %v793 = vshrl.u32 %v778, 16
        %v794 = vpack.i.b16 %v793, %v792
        %v798 = vpack.i.b16 %v777, %v743
        %v800 = vshrl.u32 %v743, 16
        %v801 = vshrl.u32 %v777, 16
        %v802 = vpack.i.b16 %v801, %v800
        %v806 = vpack.i.b16 %v779, %v745
        %v808 = vshrl.u32 %v745, 16
        %v809 = vshrl.u32 %v779, 16
        %v810 = vpack.i.b16 %v809, %v808
        %v812 = vcombine.low %v782, %v798
        %v814 = vunpack.c.l.s4 1983009808
        %v815 = vunpack.c.0.s8 %v814
        %v816 = vlaneseq
        %v817 = vshrl.u32 %v816, 7
        %v818 = vsub.s32 %v815, %v817
        %v819 = vrot.slane %v812, %v818
        %v820 = vcombine.low %v790, %v806
        %v822 = vunpack.c.l.s4 1983009808
        %v823 = vunpack.c.0.s8 %v822
        %v824 = vlaneseq
        %v825 = vshrl.u32 %v824, 7
        %v826 = vsub.s32 %v823, %v825
        %v827 = vrot.slane %v820, %v826
        %v828 = vcombine.low %v819, %v827
        %v830 = vunpack.c.l.s4 1934713408
        %v831 = vunpack.c.0.s8 %v830
        %v832 = vlaneseq
        %v833 = vshrl.u32 %v832, 7
        %v834 = vsub.s32 %v831, %v833
        %v835 = vrot.slane %v828, %v834
        %v836 = vcombine.high %v835, 0
        %v837 = vcombine.low %v786, %v802
        %v839 = vunpack.c.l.s4 1983009808
        %v840 = vunpack.c.0.s8 %v839
        %v841 = vlaneseq
        %v842 = vshrl.u32 %v841, 7
        %v843 = vsub.s32 %v840, %v842
        %v844 = vrot.slane %v837, %v843
        %v845 = vcombine.low %v794, %v810
        %v847 = vunpack.c.l.s4 1983009808
        %v848 = vunpack.c.0.s8 %v847
        %v849 = vlaneseq
        %v850 = vshrl.u32 %v849, 7
        %v851 = vsub.s32 %v848, %v850
        %v852 = vrot.slane %v845, %v851
        %v853 = vcombine.low %v844, %v852
        %v855 = vunpack.c.l.s4 1934713408
        %v856 = vunpack.c.0.s8 %v855
        %v857 = vlaneseq
        %v858 = vshrl.u32 %v857, 7
        %v859 = vsub.s32 %v856, %v858
        %v860 = vrot.slane %v853, %v859
        %v861 = vcombine.high %v860, 0
        %v864 = vpack.i.b16 %v860, %v835
        %v865 = vshrl.u32 %v835, 16
        %v866 = vshrl.u32 %v860, 16
        %v867 = vpack.i.b16 %v866, %v865
        %v870 = vpack.i.b16 %v861, %v836
        %v871 = vshrl.u32 %v836, 16
        %v872 = vshrl.u32 %v861, 16
        %v873 = vpack.i.b16 %v872, %v871
        %v874 = vlaneseq
        %v875 = vshrl.u32 %v874, 7
        %v876 = vsub.s32 2, %v875
        %v877 = vrot.slane %v450, %v876
        %879 = vrot.lane.b32.xlu0 %v877, 64
        %v880 = vpop.permute.xlu0 %879
        %v882 = vadd.f32 %v508, %v880
        %v883 = vpack.c.bf16 %v882, %v882
        %885 = vrot.lane.b32.xlu0 %v883, 120
        %v886 = vpop.permute.xlu0 %885
        %887 = vrot.lane.b32.xlu0 %v883, 112
        %v888 = vpop.permute.xlu0 %887
        %889 = vrot.lane.b32.xlu0 %v883, 104
        %v890 = vpop.permute.xlu0 %889
        %891 = vrot.lane.b32.xlu0 %v883, 64
        %v892 = vpop.permute.xlu0 %891
        %893 = vrot.lane.b32.xlu0 %v886, 64
        %v894 = vpop.permute.xlu0 %893
        %895 = vrot.lane.b32.xlu0 %v888, 64
        %v896 = vpop.permute.xlu0 %895
        %897 = vrot.lane.b32.xlu0 %v890, 64
        %v898 = vpop.permute.xlu0 %897
        %v901 = vunpack.c.l.s4 1983009808
        %v902 = vunpack.c.0.s8 %v901
        %v903 = vlaneseq
        %v904 = vshrl.u32 %v903, 7
        %v905 = vsub.s32 %v902, %v904
        %v906 = vrot.slane %v892, %v905
        %v909 = vunpack.c.l.s4 1983009808
        %v910 = vunpack.c.0.s8 %v909
        %v911 = vlaneseq
        %v912 = vshrl.u32 %v911, 7
        %v913 = vsub.s32 %v910, %v912
        %v914 = vrot.slane %v896, %v913
        %v915 = vcombine.low %v906, %v914
        %v916 = vcombine.high %v906, %v914
        %v918 = vunpack.c.l.s4 1934713408
        %v919 = vunpack.c.0.s8 %v918
        %v920 = vlaneseq
        %v921 = vshrl.u32 %v920, 7
        %v922 = vsub.s32 %v919, %v921
        %v923 = vrot.slane %v915, %v922
        %v925 = vunpack.c.l.s4 1934713408
        %v926 = vunpack.c.0.s8 %v925
        %v927 = vlaneseq
        %v928 = vshrl.u32 %v927, 7
        %v929 = vsub.s32 %v926, %v928
        %v930 = vrot.slane %v916, %v929
        %v931 = vcombine.high %v923, 0
        %v932 = vcombine.high %v930, 0
        %v935 = vunpack.c.l.s4 1983009808
        %v936 = vunpack.c.0.s8 %v935
        %v937 = vlaneseq
        %v938 = vshrl.u32 %v937, 7
        %v939 = vsub.s32 %v936, %v938
        %v940 = vrot.slane %v894, %v939
        %v943 = vunpack.c.l.s4 1983009808
        %v944 = vunpack.c.0.s8 %v943
        %v945 = vlaneseq
        %v946 = vshrl.u32 %v945, 7
        %v947 = vsub.s32 %v944, %v946
        %v948 = vrot.slane %v898, %v947
        %v949 = vcombine.low %v940, %v948
        %v950 = vcombine.high %v940, %v948
        %v952 = vunpack.c.l.s4 1934713408
        %v953 = vunpack.c.0.s8 %v952
        %v954 = vlaneseq
        %v955 = vshrl.u32 %v954, 7
        %v956 = vsub.s32 %v953, %v955
        %v957 = vrot.slane %v949, %v956
        %v959 = vunpack.c.l.s4 1934713408
        %v960 = vunpack.c.0.s8 %v959
        %v961 = vlaneseq
        %v962 = vshrl.u32 %v961, 7
        %v963 = vsub.s32 %v960, %v962
        %v964 = vrot.slane %v950, %v963
        %v965 = vcombine.high %v957, 0
        %v966 = vcombine.high %v964, 0
        %v969 = vpack.i.b16 %v957, %v923
        %v971 = vshrl.u32 %v923, 16
        %v972 = vshrl.u32 %v957, 16
        %v973 = vpack.i.b16 %v972, %v971
        %v977 = vpack.i.b16 %v965, %v931
        %v979 = vshrl.u32 %v931, 16
        %v980 = vshrl.u32 %v965, 16
        %v981 = vpack.i.b16 %v980, %v979
        %v985 = vpack.i.b16 %v964, %v930
        %v987 = vshrl.u32 %v930, 16
        %v988 = vshrl.u32 %v964, 16
        %v989 = vpack.i.b16 %v988, %v987
        %v993 = vpack.i.b16 %v966, %v932
        %v995 = vshrl.u32 %v932, 16
        %v996 = vshrl.u32 %v966, 16
        %v997 = vpack.i.b16 %v996, %v995
        %v999 = vcombine.low %v969, %v985
        %v1001 = vunpack.c.l.s4 1983009808
        %v1002 = vunpack.c.0.s8 %v1001
        %v1003 = vlaneseq
        %v1004 = vshrl.u32 %v1003, 7
        %v1005 = vsub.s32 %v1002, %v1004
        %v1006 = vrot.slane %v999, %v1005
        %v1007 = vcombine.low %v977, %v993
        %v1009 = vunpack.c.l.s4 1983009808
        %v1010 = vunpack.c.0.s8 %v1009
        %v1011 = vlaneseq
        %v1012 = vshrl.u32 %v1011, 7
        %v1013 = vsub.s32 %v1010, %v1012
        %v1014 = vrot.slane %v1007, %v1013
        %v1015 = vcombine.low %v1006, %v1014
        %v1017 = vunpack.c.l.s4 1934713408
        %v1018 = vunpack.c.0.s8 %v1017
        %v1019 = vlaneseq
        %v1020 = vshrl.u32 %v1019, 7
        %v1021 = vsub.s32 %v1018, %v1020
        %v1022 = vrot.slane %v1015, %v1021
        %v1023 = vcombine.high %v1022, 0
        %v1024 = vcombine.low %v973, %v989
        %v1026 = vunpack.c.l.s4 1983009808
        %v1027 = vunpack.c.0.s8 %v1026
        %v1028 = vlaneseq
        %v1029 = vshrl.u32 %v1028, 7
        %v1030 = vsub.s32 %v1027, %v1029
        %v1031 = vrot.slane %v1024, %v1030
        %v1032 = vcombine.low %v981, %v997
        %v1034 = vunpack.c.l.s4 1983009808
        %v1035 = vunpack.c.0.s8 %v1034
        %v1036 = vlaneseq
        %v1037 = vshrl.u32 %v1036, 7
        %v1038 = vsub.s32 %v1035, %v1037
        %v1039 = vrot.slane %v1032, %v1038
        %v1040 = vcombine.low %v1031, %v1039
        %v1042 = vunpack.c.l.s4 1934713408
        %v1043 = vunpack.c.0.s8 %v1042
        %v1044 = vlaneseq
        %v1045 = vshrl.u32 %v1044, 7
        %v1046 = vsub.s32 %v1043, %v1045
        %v1047 = vrot.slane %v1040, %v1046
        %v1048 = vcombine.high %v1047, 0
        %v1051 = vpack.i.b16 %v1047, %v1022
        %v1052 = vshrl.u32 %v1022, 16
        %v1053 = vshrl.u32 %v1047, 16
        %v1054 = vpack.i.b16 %v1053, %v1052
        %v1057 = vpack.i.b16 %v1048, %v1023
        %v1058 = vshrl.u32 %v1023, 16
        %v1059 = vshrl.u32 %v1048, 16
        %v1060 = vpack.i.b16 %v1059, %v1058
        %vm1061 = vcmask 64512
        %v1063 = vsel %vm1061, %v677, 0
        %v1066 = vsel %vm1061, %v864, 0
        %1068 = vmatprep.subr.bf16.mxu0 0
        %1069 = vmatpush1.bf16.xpose.msra.mxu0 %v1066
        %1070 = vmatprep.subr.bf16.mxu0 0
        %1071 = vmatpush1.bf16.xpose.msra.mxu0 0
        %1072 = vmatprep.subr.bf16.mxu0 0
        %1073 = vmatpush1.bf16.xpose.msra.mxu0 0
        %1074 = vmatprep.subr.bf16.mxu0 0
        %1075 = vmatpush1.bf16.xpose.msra.mxu0 0
        %1076 = vmatprep.subr.bf16.mxu0 0
        %1077 = vmatpush1.bf16.xpose.msra.mxu0 0
        %1078 = vmatprep.subr.bf16.mxu0 0
        %1079 = vmatpush1.bf16.xpose.msra.mxu0 0
        %1080 = vmatprep.subr.bf16.mxu0 0
        %1081 = vmatpush1.bf16.xpose.msra.mxu0 0
        %1082 = vmatprep.subr.bf16.mxu0 0
        %1083 = vmatpush1.bf16.xpose.msra.mxu0 0
        %1084 = vmatprep.subr.bf16.mxu0 0
        %1085 = vmatpush1.bf16.xpose.msra.mxu0 0
        %1086 = vmatprep.subr.bf16.mxu0 0
        %1087 = vmatpush1.bf16.xpose.msra.mxu0 0
        %1088 = vmatprep.subr.bf16.mxu0 0
        %1089 = vmatpush1.bf16.xpose.msra.mxu0 0
        %1090 = vmatprep.subr.bf16.mxu0 0
        %1091 = vmatpush1.bf16.xpose.msra.mxu0 0
        %1092 = vmatprep.subr.bf16.mxu0 0
        %1093 = vmatpush1.bf16.xpose.msra.mxu0 0
        %1094 = vmatprep.subr.bf16.mxu0 0
        %1095 = vmatpush1.bf16.xpose.msra.mxu0 0
        %1096 = vmatprep.subr.bf16.mxu0 0
        %1097 = vmatpush1.bf16.xpose.msra.mxu0 0
        %1098 = vmatprep.subr.bf16.mxu0 0
        %1099 = vmatpush1.bf16.xpose.msra.mxu0 0
        %1100 = vmatprep.mubr.bf16.mxu0 0
        %1101 = vmatmul.mubr.bf16.gmra.mrb[0].mxu0 %v1063
        %v1102 = vpop.f32.mrb[0].mxu0
        %v1103 = vadd.f32 0.0, %v1102
        %v1104 = vpop.f32.mrb[0].mxu0
        %v1105 = vpop.f32.mrb[0].mxu0
        %v1106 = vpop.f32.mrb[0].mxu0
        %1107 = vdwg.mxu0
        %v1109 = vsel %vm1061, %v680, 0
        %v1112 = vsel %vm1061, %v867, 0
        %1114 = vmatprep.subr.bf16.mxu0 0
        %1115 = vmatpush1.bf16.xpose.msra.mxu0 %v1112
        %1116 = vmatprep.subr.bf16.mxu0 0
        %1117 = vmatpush1.bf16.xpose.msra.mxu0 0
        %1118 = vmatprep.subr.bf16.mxu0 0
        %1119 = vmatpush1.bf16.xpose.msra.mxu0 0
        %1120 = vmatprep.subr.bf16.mxu0 0
        %1121 = vmatpush1.bf16.xpose.msra.mxu0 0
        %1122 = vmatprep.subr.bf16.mxu0 0
        %1123 = vmatpush1.bf16.xpose.msra.mxu0 0
        %1124 = vmatprep.subr.bf16.mxu0 0
        %1125 = vmatpush1.bf16.xpose.msra.mxu0 0
        %1126 = vmatprep.subr.bf16.mxu0 0
        %1127 = vmatpush1.bf16.xpose.msra.mxu0 0
        %1128 = vmatprep.subr.bf16.mxu0 0
        %1129 = vmatpush1.bf16.xpose.msra.mxu0 0
        %1130 = vmatprep.subr.bf16.mxu0 0
        %1131 = vmatpush1.bf16.xpose.msra.mxu0 0
        %1132 = vmatprep.subr.bf16.mxu0 0
        %1133 = vmatpush1.bf16.xpose.msra.mxu0 0
        %1134 = vmatprep.subr.bf16.mxu0 0
        %1135 = vmatpush1.bf16.xpose.msra.mxu0 0
        %1136 = vmatprep.subr.bf16.mxu0 0
        %1137 = vmatpush1.bf16.xpose.msra.mxu0 0
        %1138 = vmatprep.subr.bf16.mxu0 0
        %1139 = vmatpush1.bf16.xpose.msra.mxu0 0
        %1140 = vmatprep.subr.bf16.mxu0 0
        %1141 = vmatpush1.bf16.xpose.msra.mxu0 0
        %1142 = vmatprep.subr.bf16.mxu0 0
        %1143 = vmatpush1.bf16.xpose.msra.mxu0 0
        %1144 = vmatprep.subr.bf16.mxu0 0
        %1145 = vmatpush1.bf16.xpose.msra.mxu0 0
        %1146 = vmatprep.mubr.bf16.mxu0 0
        %1147 = vmatmul.mubr.bf16.gmra.mrb[0].mxu0 %v1109
        %v1148 = vpop.f32.mrb[0].mxu0
        %v1149 = vadd.f32 0.0, %v1148
        %v1150 = vpop.f32.mrb[0].mxu0
        %v1151 = vpop.f32.mrb[0].mxu0
        %v1152 = vpop.f32.mrb[0].mxu0
        %1153 = vdwg.mxu0
        %v1155 = vsel %vm1061, %v683, 0
        %v1158 = vsel %vm1061, %v870, 0
        %1160 = vmatprep.subr.bf16.mxu0 0
        %1161 = vmatpush1.bf16.xpose.msra.mxu0 %v1158
        %1162 = vmatprep.subr.bf16.mxu0 0
        %1163 = vmatpush1.bf16.xpose.msra.mxu0 0
        %1164 = vmatprep.subr.bf16.mxu0 0
        %1165 = vmatpush1.bf16.xpose.msra.mxu0 0
        %1166 = vmatprep.subr.bf16.mxu0 0
        %1167 = vmatpush1.bf16.xpose.msra.mxu0 0
        %1168 = vmatprep.subr.bf16.mxu0 0
        %1169 = vmatpush1.bf16.xpose.msra.mxu0 0
        %1170 = vmatprep.subr.bf16.mxu0 0
        %1171 = vmatpush1.bf16.xpose.msra.mxu0 0
        %1172 = vmatprep.subr.bf16.mxu0 0
        %1173 = vmatpush1.bf16.xpose.msra.mxu0 0
        %1174 = vmatprep.subr.bf16.mxu0 0
        %1175 = vmatpush1.bf16.xpose.msra.mxu0 0
        %1176 = vmatprep.subr.bf16.mxu0 0
        %1177 = vmatpush1.bf16.xpose.msra.mxu0 0
        %1178 = vmatprep.subr.bf16.mxu0 0
        %1179 = vmatpush1.bf16.xpose.msra.mxu0 0
        %1180 = vmatprep.subr.bf16.mxu0 0
        %1181 = vmatpush1.bf16.xpose.msra.mxu0 0
        %1182 = vmatprep.subr.bf16.mxu0 0
        %1183 = vmatpush1.bf16.xpose.msra.mxu0 0
        %1184 = vmatprep.subr.bf16.mxu0 0
        %1185 = vmatpush1.bf16.xpose.msra.mxu0 0
        %1186 = vmatprep.subr.bf16.mxu0 0
        %1187 = vmatpush1.bf16.xpose.msra.mxu0 0
        %1188 = vmatprep.subr.bf16.mxu0 0
        %1189 = vmatpush1.bf16.xpose.msra.mxu0 0
        %1190 = vmatprep.subr.bf16.mxu0 0
        %1191 = vmatpush1.bf16.xpose.msra.mxu0 0
        %1192 = vmatprep.mubr.bf16.mxu0 0
        %1193 = vmatmul.mubr.bf16.gmra.mrb[0].mxu0 %v1155
        %v1194 = vpop.f32.mrb[0].mxu0
        %v1195 = vadd.f32 0.0, %v1194
        %v1196 = vpop.f32.mrb[0].mxu0
        %v1197 = vpop.f32.mrb[0].mxu0
        %v1198 = vpop.f32.mrb[0].mxu0
        %1199 = vdwg.mxu0
        %v1201 = vsel %vm1061, %v686, 0
        %v1204 = vsel %vm1061, %v873, 0
        %1206 = vmatprep.subr.bf16.mxu0 0
        %1207 = vmatpush1.bf16.xpose.msra.mxu0 %v1204
        %1208 = vmatprep.subr.bf16.mxu0 0
        %1209 = vmatpush1.bf16.xpose.msra.mxu0 0
        %1210 = vmatprep.subr.bf16.mxu0 0
        %1211 = vmatpush1.bf16.xpose.msra.mxu0 0
        %1212 = vmatprep.subr.bf16.mxu0 0
        %1213 = vmatpush1.bf16.xpose.msra.mxu0 0
        %1214 = vmatprep.subr.bf16.mxu0 0
        %1215 = vmatpush1.bf16.xpose.msra.mxu0 0
        %1216 = vmatprep.subr.bf16.mxu0 0
        %1217 = vmatpush1.bf16.xpose.msra.mxu0 0
        %1218 = vmatprep.subr.bf16.mxu0 0
        %1219 = vmatpush1.bf16.xpose.msra.mxu0 0
        %1220 = vmatprep.subr.bf16.mxu0 0
        %1221 = vmatpush1.bf16.xpose.msra.mxu0 0
        %1222 = vmatprep.subr.bf16.mxu0 0
        %1223 = vmatpush1.bf16.xpose.msra.mxu0 0
        %1224 = vmatprep.subr.bf16.mxu0 0
        %1225 = vmatpush1.bf16.xpose.msra.mxu0 0
        %1226 = vmatprep.subr.bf16.mxu0 0
        %1227 = vmatpush1.bf16.xpose.msra.mxu0 0
        %1228 = vmatprep.subr.bf16.mxu0 0
        %1229 = vmatpush1.bf16.xpose.msra.mxu0 0
        %1230 = vmatprep.subr.bf16.mxu0 0
        %1231 = vmatpush1.bf16.xpose.msra.mxu0 0
        %1232 = vmatprep.subr.bf16.mxu0 0
        %1233 = vmatpush1.bf16.xpose.msra.mxu0 0
        %1234 = vmatprep.subr.bf16.mxu0 0
        %1235 = vmatpush1.bf16.xpose.msra.mxu0 0
        %1236 = vmatprep.subr.bf16.mxu0 0
        %1237 = vmatpush1.bf16.xpose.msra.mxu0 0
        %1238 = vmatprep.mubr.bf16.mxu0 0
        %1239 = vmatmul.mubr.bf16.gmra.mrb[0].mxu0 %v1201
        %v1240 = vpop.f32.mrb[0].mxu0
        %v1241 = vadd.f32 0.0, %v1240
        %v1242 = vpop.f32.mrb[0].mxu0
        %v1243 = vpop.f32.mrb[0].mxu0
        %v1244 = vpop.f32.mrb[0].mxu0
        %1245 = vdwg.mxu0
        %v1246 = vld [vmem:[%s412] sm:$0x1]
        %v1248 = vlaneseq
        %v1249 = vshrl.u32 %v1248, 7
        %v1250 = vsub.s32 0, %v1249
        %v1251 = vrot.slane %v1246, %v1250
        %v1253 = vadd.f32 %v1103, %v1251
        %v1254 = vadd.f32 %v1149, %v1251
        %v1255 = vadd.f32 %v1195, %v1251
        %v1256 = vadd.f32 %v1241, %v1251
        %v1257 = vsel %vm1061, %v1253, -inf
        %1258 = vmax.xlane.f32.xlu0 %v1257
        %v1259 = vpop.xlane.xlu0 %1258
        %v1260 = vsel %vm1061, %v1254, -inf
        %1261 = vmax.xlane.f32.xlu0 %v1260
        %v1262 = vpop.xlane.xlu0 %1261
        %v1263 = vsel %vm1061, %v1255, -inf
        %1264 = vmax.xlane.f32.xlu0 %v1263
        %v1265 = vpop.xlane.xlu0 %1264
        %v1266 = vsel %vm1061, %v1256, -inf
        %1267 = vmax.xlane.f32.xlu0 %v1266
        %v1268 = vpop.xlane.xlu0 %1267
        %v1269 = vsub.f32 %v1253, %v1259
        %v1270 = vsub.f32 %v1254, %v1262
        %v1271 = vsub.f32 %v1255, %v1265
        %v1272 = vsub.f32 %v1256, %v1268
        %v1273 = vmul.f32 %v1269, 1.442695
        %v1274 = vpow.pop %v1273
        %v1275 = vmul.f32 %v1270, 1.442695
        %v1276 = vpow.pop %v1275
        %v1277 = vmul.f32 %v1271, 1.442695
        %v1278 = vpow.pop %v1277
        %v1279 = vmul.f32 %v1272, 1.442695
        %v1280 = vpow.pop %v1279
        %v1281 = vsel %vm1061, %v1274, 0.0
        %1282 = vadd.xlane.f32.xlu0 %v1281
        %v1283 = vpop.xlane.xlu0 %1282
        %v1284 = vsel %vm1061, %v1276, 0.0
        %1285 = vadd.xlane.f32.xlu0 %v1284
        %v1286 = vpop.xlane.xlu0 %1285
        %v1287 = vsel %vm1061, %v1278, 0.0
        %1288 = vadd.xlane.f32.xlu0 %v1287
        %v1289 = vpop.xlane.xlu0 %1288
        %v1290 = vsel %vm1061, %v1280, 0.0
        %1291 = vadd.xlane.f32.xlu0 %v1290
        %v1292 = vpop.xlane.xlu0 %1291
        %v1293 = vrcp.pop %v1283
        %v1294 = vrcp.pop %v1286
        %v1295 = vrcp.pop %v1289
        %v1296 = vrcp.pop %v1292
        %v1297 = vmul.f32 %v1274, %v1293
        %v1298 = vmul.f32 %v1276, %v1294
        %v1299 = vmul.f32 %v1278, %v1295
        %v1300 = vmul.f32 %v1280, %v1296
        %v1301 = vpack.c.bf16 %v1297, %v1297
        %v1302 = vpack.c.bf16 %v1298, %v1298
        %v1303 = vpack.c.bf16 %v1299, %v1299
        %v1304 = vpack.c.bf16 %v1300, %v1300
        %v1306 = vsel %vm1061, %v1301, 0
        %vm1308 = vcmask 1043456
        %v1310 = vsel %vm1308, %v1051, 0
        %1312 = vmatprep.subr.bf16.mxu0 0
        %1313 = vmatpush1.bf16.msra.mxu0 %v1310
        %1314 = vmatprep.subr.bf16.mxu0 0
        %1315 = vmatpush1.bf16.msra.mxu0 0
        %1316 = vmatprep.subr.bf16.mxu0 0
        %1317 = vmatpush1.bf16.msra.mxu0 0
        %1318 = vmatprep.subr.bf16.mxu0 0
        %1319 = vmatpush1.bf16.msra.mxu0 0
        %1320 = vmatprep.subr.bf16.mxu0 0
        %1321 = vmatpush1.bf16.msra.mxu0 0
        %1322 = vmatprep.subr.bf16.mxu0 0
        %1323 = vmatpush1.bf16.msra.mxu0 0
        %1324 = vmatprep.subr.bf16.mxu0 0
        %1325 = vmatpush1.bf16.msra.mxu0 0
        %1326 = vmatprep.subr.bf16.mxu0 0
        %1327 = vmatpush1.bf16.msra.mxu0 0
        %1328 = vmatprep.subr.bf16.mxu0 0
        %1329 = vmatpush1.bf16.msra.mxu0 0
        %1330 = vmatprep.subr.bf16.mxu0 0
        %1331 = vmatpush1.bf16.msra.mxu0 0
        %1332 = vmatprep.subr.bf16.mxu0 0
        %1333 = vmatpush1.bf16.msra.mxu0 0
        %1334 = vmatprep.subr.bf16.mxu0 0
        %1335 = vmatpush1.bf16.msra.mxu0 0
        %1336 = vmatprep.subr.bf16.mxu0 0
        %1337 = vmatpush1.bf16.msra.mxu0 0
        %1338 = vmatprep.subr.bf16.mxu0 0
        %1339 = vmatpush1.bf16.msra.mxu0 0
        %1340 = vmatprep.subr.bf16.mxu0 0
        %1341 = vmatpush1.bf16.msra.mxu0 0
        %1342 = vmatprep.subr.bf16.mxu0 0
        %1343 = vmatpush1.bf16.msra.mxu0 0
        %1344 = vmatprep.mubr.bf16.mxu0 0
        %1345 = vmatmul.mubr.bf16.gmra.mrb[0].mxu0 %v1306
        %v1346 = vpop.f32.mrb[0].mxu0
        %v1347 = vadd.f32 0.0, %v1346
        %v1348 = vpop.f32.mrb[0].mxu0
        %v1349 = vpop.f32.mrb[0].mxu0
        %v1350 = vpop.f32.mrb[0].mxu0
        %1351 = vdwg.mxu0
        %v1353 = vsel %vm1061, %v1302, 0
        %v1356 = vsel %vm1308, %v1054, 0
        %1358 = vmatprep.subr.bf16.mxu0 0
        %1359 = vmatpush1.bf16.msra.mxu0 %v1356
        %1360 = vmatprep.subr.bf16.mxu0 0
        %1361 = vmatpush1.bf16.msra.mxu0 0
        %1362 = vmatprep.subr.bf16.mxu0 0
        %1363 = vmatpush1.bf16.msra.mxu0 0
        %1364 = vmatprep.subr.bf16.mxu0 0
        %1365 = vmatpush1.bf16.msra.mxu0 0
        %1366 = vmatprep.subr.bf16.mxu0 0
        %1367 = vmatpush1.bf16.msra.mxu0 0
        %1368 = vmatprep.subr.bf16.mxu0 0
        %1369 = vmatpush1.bf16.msra.mxu0 0
        %1370 = vmatprep.subr.bf16.mxu0 0
        %1371 = vmatpush1.bf16.msra.mxu0 0
        %1372 = vmatprep.subr.bf16.mxu0 0
        %1373 = vmatpush1.bf16.msra.mxu0 0
        %1374 = vmatprep.subr.bf16.mxu0 0
        %1375 = vmatpush1.bf16.msra.mxu0 0
        %1376 = vmatprep.subr.bf16.mxu0 0
        %1377 = vmatpush1.bf16.msra.mxu0 0
        %1378 = vmatprep.subr.bf16.mxu0 0
        %1379 = vmatpush1.bf16.msra.mxu0 0
        %1380 = vmatprep.subr.bf16.mxu0 0
        %1381 = vmatpush1.bf16.msra.mxu0 0
        %1382 = vmatprep.subr.bf16.mxu0 0
        %1383 = vmatpush1.bf16.msra.mxu0 0
        %1384 = vmatprep.subr.bf16.mxu0 0
        %1385 = vmatpush1.bf16.msra.mxu0 0
        %1386 = vmatprep.subr.bf16.mxu0 0
        %1387 = vmatpush1.bf16.msra.mxu0 0
        %1388 = vmatprep.subr.bf16.mxu0 0
        %1389 = vmatpush1.bf16.msra.mxu0 0
        %1390 = vmatprep.mubr.bf16.mxu0 0
        %1391 = vmatmul.mubr.bf16.gmra.mrb[0].mxu0 %v1353
        %v1392 = vpop.f32.mrb[0].mxu0
        %v1393 = vadd.f32 0.0, %v1392
        %v1394 = vpop.f32.mrb[0].mxu0
        %v1395 = vpop.f32.mrb[0].mxu0
        %v1396 = vpop.f32.mrb[0].mxu0
        %1397 = vdwg.mxu0
        %v1399 = vsel %vm1061, %v1303, 0
        %v1402 = vsel %vm1308, %v1057, 0
        %1404 = vmatprep.subr.bf16.mxu0 0
        %1405 = vmatpush1.bf16.msra.mxu0 %v1402
        %1406 = vmatprep.subr.bf16.mxu0 0
        %1407 = vmatpush1.bf16.msra.mxu0 0
        %1408 = vmatprep.subr.bf16.mxu0 0
        %1409 = vmatpush1.bf16.msra.mxu0 0
        %1410 = vmatprep.subr.bf16.mxu0 0
        %1411 = vmatpush1.bf16.msra.mxu0 0
        %1412 = vmatprep.subr.bf16.mxu0 0
        %1413 = vmatpush1.bf16.msra.mxu0 0
        %1414 = vmatprep.subr.bf16.mxu0 0
        %1415 = vmatpush1.bf16.msra.mxu0 0
        %1416 = vmatprep.subr.bf16.mxu0 0
        %1417 = vmatpush1.bf16.msra.mxu0 0
        %1418 = vmatprep.subr.bf16.mxu0 0
        %1419 = vmatpush1.bf16.msra.mxu0 0
        %1420 = vmatprep.subr.bf16.mxu0 0
        %1421 = vmatpush1.bf16.msra.mxu0 0
        %1422 = vmatprep.subr.bf16.mxu0 0
        %1423 = vmatpush1.bf16.msra.mxu0 0
        %1424 = vmatprep.subr.bf16.mxu0 0
        %1425 = vmatpush1.bf16.msra.mxu0 0
        %1426 = vmatprep.subr.bf16.mxu0 0
        %1427 = vmatpush1.bf16.msra.mxu0 0
        %1428 = vmatprep.subr.bf16.mxu0 0
        %1429 = vmatpush1.bf16.msra.mxu0 0
        %1430 = vmatprep.subr.bf16.mxu0 0
        %1431 = vmatpush1.bf16.msra.mxu0 0
        %1432 = vmatprep.subr.bf16.mxu0 0
        %1433 = vmatpush1.bf16.msra.mxu0 0
        %1434 = vmatprep.subr.bf16.mxu0 0
        %1435 = vmatpush1.bf16.msra.mxu0 0
        %1436 = vmatprep.mubr.bf16.mxu0 0
        %1437 = vmatmul.mubr.bf16.gmra.mrb[0].mxu0 %v1399
        %v1438 = vpop.f32.mrb[0].mxu0
        %v1439 = vadd.f32 0.0, %v1438
        %v1440 = vpop.f32.mrb[0].mxu0
        %v1441 = vpop.f32.mrb[0].mxu0
        %v1442 = vpop.f32.mrb[0].mxu0
        %1443 = vdwg.mxu0
        %v1445 = vsel %vm1061, %v1304, 0
        %v1448 = vsel %vm1308, %v1060, 0
        %1450 = vmatprep.subr.bf16.mxu0 0
        %1451 = vmatpush1.bf16.msra.mxu0 %v1448
        %1452 = vmatprep.subr.bf16.mxu0 0
        %1453 = vmatpush1.bf16.msra.mxu0 0
        %1454 = vmatprep.subr.bf16.mxu0 0
        %1455 = vmatpush1.bf16.msra.mxu0 0
        %1456 = vmatprep.subr.bf16.mxu0 0
        %1457 = vmatpush1.bf16.msra.mxu0 0
        %1458 = vmatprep.subr.bf16.mxu0 0
        %1459 = vmatpush1.bf16.msra.mxu0 0
        %1460 = vmatprep.subr.bf16.mxu0 0
        %1461 = vmatpush1.bf16.msra.mxu0 0
        %1462 = vmatprep.subr.bf16.mxu0 0
        %1463 = vmatpush1.bf16.msra.mxu0 0
        %1464 = vmatprep.subr.bf16.mxu0 0
        %1465 = vmatpush1.bf16.msra.mxu0 0
        %1466 = vmatprep.subr.bf16.mxu0 0
        %1467 = vmatpush1.bf16.msra.mxu0 0
        %1468 = vmatprep.subr.bf16.mxu0 0
        %1469 = vmatpush1.bf16.msra.mxu0 0
        %1470 = vmatprep.subr.bf16.mxu0 0
        %1471 = vmatpush1.bf16.msra.mxu0 0
        %1472 = vmatprep.subr.bf16.mxu0 0
        %1473 = vmatpush1.bf16.msra.mxu0 0
        %1474 = vmatprep.subr.bf16.mxu0 0
        %1475 = vmatpush1.bf16.msra.mxu0 0
        %1476 = vmatprep.subr.bf16.mxu0 0
        %1477 = vmatpush1.bf16.msra.mxu0 0
        %1478 = vmatprep.subr.bf16.mxu0 0
        %1479 = vmatpush1.bf16.msra.mxu0 0
        %1480 = vmatprep.subr.bf16.mxu0 0
        %1481 = vmatpush1.bf16.msra.mxu0 0
        %1482 = vmatprep.mubr.bf16.mxu0 0
        %1483 = vmatmul.mubr.bf16.gmra.mrb[0].mxu0 %v1445
        %v1484 = vpop.f32.mrb[0].mxu0
        %v1485 = vadd.f32 0.0, %v1484
        %v1486 = vpop.f32.mrb[0].mxu0
        %v1487 = vpop.f32.mrb[0].mxu0
        %v1488 = vpop.f32.mrb[0].mxu0
        %1489 = vdwg.mxu0
        %v1490 = vcombine.low %v1347, %v1439
        %v1491 = vcombine.high %v1347, %v1439
        %v1493 = vunpack.c.l.s4 1983009808
        %v1494 = vunpack.c.0.s8 %v1493
        %v1495 = vlaneseq
        %v1496 = vshrl.u32 %v1495, 7
        %v1497 = vsub.s32 %v1494, %v1496
        %v1498 = vrot.slane %v1490, %v1497
        %v1500 = vunpack.c.l.s4 1983009808
        %v1501 = vunpack.c.0.s8 %v1500
        %v1502 = vlaneseq
        %v1503 = vshrl.u32 %v1502, 7
        %v1504 = vsub.s32 %v1501, %v1503
        %v1505 = vrot.slane %v1491, %v1504
        %v1506 = vcombine.low %v1393, %v1485
        %v1507 = vcombine.high %v1393, %v1485
        %v1509 = vunpack.c.l.s4 1983009808
        %v1510 = vunpack.c.0.s8 %v1509
        %v1511 = vlaneseq
        %v1512 = vshrl.u32 %v1511, 7
        %v1513 = vsub.s32 %v1510, %v1512
        %v1514 = vrot.slane %v1506, %v1513
        %v1516 = vunpack.c.l.s4 1983009808
        %v1517 = vunpack.c.0.s8 %v1516
        %v1518 = vlaneseq
        %v1519 = vshrl.u32 %v1518, 7
        %v1520 = vsub.s32 %v1517, %v1519
        %v1521 = vrot.slane %v1507, %v1520
        %v1522 = vcombine.low %v1498, %v1514
        %v1523 = vcombine.high %v1498, %v1514
        %v1525 = vunpack.c.l.s4 1934713408
        %v1526 = vunpack.c.0.s8 %v1525
        %v1527 = vlaneseq
        %v1528 = vshrl.u32 %v1527, 7
        %v1529 = vsub.s32 %v1526, %v1528
        %v1530 = vrot.slane %v1522, %v1529
        %v1532 = vunpack.c.l.s4 1934713408
        %v1533 = vunpack.c.0.s8 %v1532
        %v1534 = vlaneseq
        %v1535 = vshrl.u32 %v1534, 7
        %v1536 = vsub.s32 %v1533, %v1535
        %v1537 = vrot.slane %v1523, %v1536
        %v1538 = vcombine.low %v1505, %v1521
        %v1539 = vcombine.high %v1505, %v1521
        %v1541 = vunpack.c.l.s4 1934713408
        %v1542 = vunpack.c.0.s8 %v1541
        %v1543 = vlaneseq
        %v1544 = vshrl.u32 %v1543, 7
        %v1545 = vsub.s32 %v1542, %v1544
        %v1546 = vrot.slane %v1538, %v1545
        %v1548 = vunpack.c.l.s4 1934713408
        %v1549 = vunpack.c.0.s8 %v1548
        %v1550 = vlaneseq
        %v1551 = vshrl.u32 %v1550, 7
        %v1552 = vsub.s32 %v1549, %v1551
        %v1553 = vrot.slane %v1539, %v1552
        %v1554 = vcombine.high %v1530, 0.0
        %v1555 = vcombine.high %v1537, 0.0
        %v1556 = vcombine.high %v1546, 0.0
        %v1557 = vcombine.high %v1553, 0.0
        %v1558 = vcombine.low %v1530, %v1537
        %v1560 = vunpack.c.l.s4 1983009808
        %v1561 = vunpack.c.0.s8 %v1560
        %v1562 = vlaneseq
        %v1563 = vshrl.u32 %v1562, 7
        %v1564 = vsub.s32 %v1561, %v1563
        %v1565 = vrot.slane %v1558, %v1564
        %v1566 = vcombine.low %v1554, %v1555
        %v1568 = vunpack.c.l.s4 1983009808
        %v1569 = vunpack.c.0.s8 %v1568
        %v1570 = vlaneseq
        %v1571 = vshrl.u32 %v1570, 7
        %v1572 = vsub.s32 %v1569, %v1571
        %v1573 = vrot.slane %v1566, %v1572
        %v1574 = vcombine.low %v1546, %v1553
        %v1576 = vunpack.c.l.s4 1983009808
        %v1577 = vunpack.c.0.s8 %v1576
        %v1578 = vlaneseq
        %v1579 = vshrl.u32 %v1578, 7
        %v1580 = vsub.s32 %v1577, %v1579
        %v1581 = vrot.slane %v1574, %v1580
        %v1582 = vcombine.low %v1556, %v1557
        %v1584 = vunpack.c.l.s4 1983009808
        %v1585 = vunpack.c.0.s8 %v1584
        %v1586 = vlaneseq
        %v1587 = vshrl.u32 %v1586, 7
        %v1588 = vsub.s32 %v1585, %v1587
        %v1589 = vrot.slane %v1582, %v1588
        %v1590 = vcombine.low %v1565, %v1573
        %v1591 = vcombine.high %v1565, %v1573
        %v1593 = vunpack.c.l.s4 1934713408
        %v1594 = vunpack.c.0.s8 %v1593
        %v1595 = vlaneseq
        %v1596 = vshrl.u32 %v1595, 7
        %v1597 = vsub.s32 %v1594, %v1596
        %v1598 = vrot.slane %v1590, %v1597
        %v1600 = vunpack.c.l.s4 1934713408
        %v1601 = vunpack.c.0.s8 %v1600
        %v1602 = vlaneseq
        %v1603 = vshrl.u32 %v1602, 7
        %v1604 = vsub.s32 %v1601, %v1603
        %v1605 = vrot.slane %v1591, %v1604
        %v1606 = vcombine.low %v1581, %v1589
        %v1607 = vcombine.high %v1581, %v1589
        %v1609 = vunpack.c.l.s4 1934713408
        %v1610 = vunpack.c.0.s8 %v1609
        %v1611 = vlaneseq
        %v1612 = vshrl.u32 %v1611, 7
        %v1613 = vsub.s32 %v1610, %v1612
        %v1614 = vrot.slane %v1606, %v1613
        %v1616 = vunpack.c.l.s4 1934713408
        %v1617 = vunpack.c.0.s8 %v1616
        %v1618 = vlaneseq
        %v1619 = vshrl.u32 %v1618, 7
        %v1620 = vsub.s32 %v1617, %v1619
        %v1621 = vrot.slane %v1607, %v1620
        %v1622 = vcombine.low %v1598, %v1614
        %v1623 = vcombine.high %v1598, %v1614
        %v1624 = vcombine.low %v1605, %v1621
        %v1625 = vcombine.high %v1605, %v1621
        %1627 = vrot.lane.b32.xlu0 %v1623, 8
        %v1628 = vpop.permute.xlu0 %1627
        %1631 = vrot.lane.b32.xlu0 %v1624, 16
        %v1632 = vpop.permute.xlu0 %1631
        %1635 = vrot.lane.b32.xlu0 %v1625, 24
        %v1636 = vpop.permute.xlu0 %1635
        %v1638 = vsel %vm1061, %v1622, %v1628
        %vm1639 = vcmask 130048
        %v1640 = vsel %vm1639, %v1638, %v1632
        %vm1641 = vcmask 195584
        %v1642 = vsel %vm1641, %v1640, %v1636
        %v1643 = vpack.c.bf16 %v1642, %v1642
        %v1644 = vld [vmem:[%s422] sm:$0xf]
        %v1645 = vld [vmem:[%s422 + $0x4] sm:$0xf]
        %v1646 = vld [vmem:[%s422 + $0x8] sm:$0xf]
        %v1647 = vld [vmem:[%s422 + $0xc] sm:$0xf]
        %v1648 = vlaneseq
        %v1649 = vshrl.u32 %v1648, 7
        %v1650 = vsub.s32 3, %v1649
        %v1651 = vrot.slane %v450, %v1650
        %v1656 = vunpack.c.l.b16 %v1644
        %v1657 = vunpack.c.l.b16 %v1645
        %v1658 = vunpack.c.l.b16 %v1646
        %v1659 = vunpack.c.l.b16 %v1647
        %v1660 = vpack.c.b16 %v1657, %v1656
        %v1661 = vpack.c.b16 %v1659, %v1658
        %v1665 = vsel %vm469, %v1643, 0
        %1667 = vmatprep.subr.bf16.mxu0 0
        %1668 = vmatpush1.bf16.msra.mxu0 %v1660
        %1669 = vmatprep.subr.bf16.mxu0 0
        %1670 = vmatpush1.bf16.msra.mxu0 %v1661
        %1671 = vmatprep.subr.bf16.mxu0 0
        %1672 = vmatpush1.bf16.msra.mxu0 0
        %1673 = vmatprep.subr.bf16.mxu0 0
        %1674 = vmatpush1.bf16.msra.mxu0 0
        %1675 = vmatprep.subr.bf16.mxu0 0
        %1676 = vmatpush1.bf16.msra.mxu0 0
        %1677 = vmatprep.subr.bf16.mxu0 0
        %1678 = vmatpush1.bf16.msra.mxu0 0
        %1679 = vmatprep.subr.bf16.mxu0 0
        %1680 = vmatpush1.bf16.msra.mxu0 0
        %1681 = vmatprep.subr.bf16.mxu0 0
        %1682 = vmatpush1.bf16.msra.mxu0 0
        %1683 = vmatprep.subr.bf16.mxu0 0
        %1684 = vmatpush1.bf16.msra.mxu0 0
        %1685 = vmatprep.subr.bf16.mxu0 0
        %1686 = vmatpush1.bf16.msra.mxu0 0
        %1687 = vmatprep.subr.bf16.mxu0 0
        %1688 = vmatpush1.bf16.msra.mxu0 0
        %1689 = vmatprep.subr.bf16.mxu0 0
        %1690 = vmatpush1.bf16.msra.mxu0 0
        %1691 = vmatprep.subr.bf16.mxu0 0
        %1692 = vmatpush1.bf16.msra.mxu0 0
        %1693 = vmatprep.subr.bf16.mxu0 0
        %1694 = vmatpush1.bf16.msra.mxu0 0
        %1695 = vmatprep.subr.bf16.mxu0 0
        %1696 = vmatpush1.bf16.msra.mxu0 0
        %1697 = vmatprep.subr.bf16.mxu0 0
        %1698 = vmatpush1.bf16.msra.mxu0 0
        %1699 = vmatprep.mubr.bf16.mxu0 0
        %1700 = vmatmul.mubr.bf16.gmra.mrb[0].mxu0 %v1665
        %v1701 = vpop.f32.mrb[0].mxu0
        %v1702 = vadd.f32 %v1651, %v1701
        %v1703 = vpop.f32.mrb[0].mxu0
        %v1704 = vpop.f32.mrb[0].mxu0
        %v1705 = vpop.f32.mrb[0].mxu0
        %1706 = vdwg.mxu0
        %v1707 = vadd.f32 %v1702, %v449
        %v1708 = vsel %vm469, %v1707, 0.0
        %1709 = vadd.xlane.f32.xlu0 %v1708
        %v1710 = vpop.xlane.xlu0 %1709
        %v1711 = vrcp.pop 32.0
        %v1712 = vmul.f32 %v1710, %v1711
        %v1713 = vsub.f32 %v1707, %v1712
        %v1714 = vmul.f32 %v1713, %v1713
        %v1715 = vsel %vm469, %v1714, 0.0
        %1716 = vadd.xlane.f32.xlu0 %v1715
        %v1717 = vpop.xlane.xlu0 %1716
        %v1718 = vmul.f32 %v1717, %v1711
        %v1719 = vadd.f32 %v1718, 1e-05
        %v1720 = vrsqrt.pop %v1719
        %v1721 = vmul.f32 %v1713, %v1720
        %v1722 = vlaneseq
        %v1723 = vshrl.u32 %v1722, 7
        %v1724 = vsub.s32 4, %v1723
        %v1725 = vrot.slane %v450, %v1724
        %v1726 = vmul.f32 %v1721, %v1725
        %v1727 = vlaneseq
        %v1728 = vshrl.u32 %v1727, 7
        %v1729 = vsub.s32 5, %v1728
        %v1730 = vrot.slane %v450, %v1729
        %v1731 = vadd.f32 %v1726, %v1730
        %v1732 = vpack.c.bf16 %v1731, %v1731
        %v1733 = vld [vmem:[%s427] sm:$0xf]
        %v1734 = vld [vmem:[%s427 + $0x4] sm:$0xf]
        %v1735 = vld [vmem:[%s427 + $0x8] sm:$0xf]
        %v1736 = vld [vmem:[%s427 + $0xc] sm:$0xf]
        %v1737 = vld [vmem:[%s440] sm:$0x1]
        %v1739 = vlaneseq
        %v1740 = vshrl.u32 %v1739, 7
        %v1741 = vsub.s32 0, %v1740
        %v1742 = vrot.slane %v1737, %v1741
        %v1748 = vunpack.c.l.b16 %v1733
        %v1749 = vunpack.c.l.b16 %v1734
        %v1750 = vunpack.c.l.b16 %v1735
        %v1751 = vunpack.c.l.b16 %v1736
        %v1752 = vpack.c.b16 %v1749, %v1748
        %v1753 = vpack.c.b16 %v1751, %v1750
        %v1757 = vsel %vm469, %v1732, 0
        %1759 = vmatprep.subr.bf16.mxu0 0
        %1760 = vmatpush1.bf16.msra.mxu0 %v1752
        %1761 = vmatprep.subr.bf16.mxu0 0
        %1762 = vmatpush1.bf16.msra.mxu0 %v1753
        %1763 = vmatprep.subr.bf16.mxu0 0
        %1764 = vmatpush1.bf16.msra.mxu0 0
        %1765 = vmatprep.subr.bf16.mxu0 0
        %1766 = vmatpush1.bf16.msra.mxu0 0
        %1767 = vmatprep.subr.bf16.mxu0 0
        %1768 = vmatpush1.bf16.msra.mxu0 0
        %1769 = vmatprep.subr.bf16.mxu0 0
        %1770 = vmatpush1.bf16.msra.mxu0 0
        %1771 = vmatprep.subr.bf16.mxu0 0
        %1772 = vmatpush1.bf16.msra.mxu0 0
        %1773 = vmatprep.subr.bf16.mxu0 0
        %1774 = vmatpush1.bf16.msra.mxu0 0
        %1775 = vmatprep.subr.bf16.mxu0 0
        %1776 = vmatpush1.bf16.msra.mxu0 0
        %1777 = vmatprep.subr.bf16.mxu0 0
        %1778 = vmatpush1.bf16.msra.mxu0 0
        %1779 = vmatprep.subr.bf16.mxu0 0
        %1780 = vmatpush1.bf16.msra.mxu0 0
        %1781 = vmatprep.subr.bf16.mxu0 0
        %1782 = vmatpush1.bf16.msra.mxu0 0
        %1783 = vmatprep.subr.bf16.mxu0 0
        %1784 = vmatpush1.bf16.msra.mxu0 0
        %1785 = vmatprep.subr.bf16.mxu0 0
        %1786 = vmatpush1.bf16.msra.mxu0 0
        %1787 = vmatprep.subr.bf16.mxu0 0
        %1788 = vmatpush1.bf16.msra.mxu0 0
        %1789 = vmatprep.subr.bf16.mxu0 0
        %1790 = vmatpush1.bf16.msra.mxu0 0
        %1791 = vmatprep.mubr.bf16.mxu0 0
        %1792 = vmatmul.mubr.bf16.gmra.mrb[0].mxu0 %v1757
        %v1793 = vpop.f32.mrb[0].mxu0
        %v1794 = vadd.f32 %v1742, %v1793
        %v1795 = vpop.f32.mrb[0].mxu0
        %v1796 = vpop.f32.mrb[0].mxu0
        %v1797 = vpop.f32.mrb[0].mxu0
        %1798 = vdwg.mxu0
        %v1799 = vmax.f32 %v1794, 0.0
        %v1800 = vpack.c.bf16 %v1799, %v1799
        %v1801 = vld [vmem:[%s432] sm:$0xf]
        %v1802 = vld [vmem:[%s432 + $0x4] sm:$0xf]
        %v1803 = vld [vmem:[%s432 + $0x8] sm:$0xf]
        %v1804 = vld [vmem:[%s432 + $0xc] sm:$0xf]
        %v1805 = vld [vmem:[%s432 + $0x10] sm:$0xf]
        %v1806 = vld [vmem:[%s432 + $0x14] sm:$0xf]
        %v1807 = vld [vmem:[%s432 + $0x18] sm:$0xf]
        %v1808 = vld [vmem:[%s432 + $0x1c] sm:$0xf]
        %v1809 = vld [vmem:[%s432 + $0x20] sm:$0xf]
        %v1810 = vld [vmem:[%s432 + $0x24] sm:$0xf]
        %v1811 = vld [vmem:[%s432 + $0x28] sm:$0xf]
        %v1812 = vld [vmem:[%s432 + $0x2c] sm:$0xf]
        %v1813 = vld [vmem:[%s432 + $0x30] sm:$0xf]
        %v1814 = vld [vmem:[%s432 + $0x34] sm:$0xf]
        %v1815 = vld [vmem:[%s432 + $0x38] sm:$0xf]
        %v1816 = vld [vmem:[%s432 + $0x3c] sm:$0xf]
        %v1817 = vlaneseq
        %v1818 = vshrl.u32 %v1817, 7
        %v1819 = vsub.s32 6, %v1818
        %v1820 = vrot.slane %v450, %v1819
        %v1837 = vunpack.c.l.b16 %v1801
        %v1838 = vunpack.c.l.b16 %v1802
        %v1839 = vunpack.c.l.b16 %v1803
        %v1840 = vunpack.c.l.b16 %v1804
        %v1841 = vunpack.c.l.b16 %v1805
        %v1842 = vunpack.c.l.b16 %v1806
        %v1843 = vunpack.c.l.b16 %v1807
        %v1844 = vunpack.c.l.b16 %v1808
        %v1845 = vunpack.c.l.b16 %v1809
        %v1846 = vunpack.c.l.b16 %v1810
        %v1847 = vunpack.c.l.b16 %v1811
        %v1848 = vunpack.c.l.b16 %v1812
        %v1849 = vunpack.c.l.b16 %v1813
        %v1850 = vunpack.c.l.b16 %v1814
        %v1851 = vunpack.c.l.b16 %v1815
        %v1852 = vunpack.c.l.b16 %v1816
        %v1853 = vpack.c.b16 %v1838, %v1837
        %v1854 = vpack.c.b16 %v1840, %v1839
        %v1855 = vpack.c.b16 %v1842, %v1841
        %v1856 = vpack.c.b16 %v1844, %v1843
        %v1857 = vpack.c.b16 %v1846, %v1845
        %v1858 = vpack.c.b16 %v1848, %v1847
        %v1859 = vpack.c.b16 %v1850, %v1849
        %v1860 = vpack.c.b16 %v1852, %v1851
        %1869 = vmatprep.subr.bf16.mxu0 0
        %1870 = vmatpush1.bf16.msra.mxu0 %v1853
        %1871 = vmatprep.subr.bf16.mxu0 0
        %1872 = vmatpush1.bf16.msra.mxu0 %v1854
        %1873 = vmatprep.subr.bf16.mxu0 0
        %1874 = vmatpush1.bf16.msra.mxu0 %v1855
        %1875 = vmatprep.subr.bf16.mxu0 0
        %1876 = vmatpush1.bf16.msra.mxu0 %v1856
        %1877 = vmatprep.subr.bf16.mxu0 0
        %1878 = vmatpush1.bf16.msra.mxu0 %v1857
        %1879 = vmatprep.subr.bf16.mxu0 0
        %1880 = vmatpush1.bf16.msra.mxu0 %v1858
        %1881 = vmatprep.subr.bf16.mxu0 0
        %1882 = vmatpush1.bf16.msra.mxu0 %v1859
        %1883 = vmatprep.subr.bf16.mxu0 0
        %1884 = vmatpush1.bf16.msra.mxu0 %v1860
        %1885 = vmatprep.subr.bf16.mxu0 0
        %1886 = vmatpush1.bf16.msra.mxu0 0
        %1887 = vmatprep.subr.bf16.mxu0 0
        %1888 = vmatpush1.bf16.msra.mxu0 0
        %1889 = vmatprep.subr.bf16.mxu0 0
        %1890 = vmatpush1.bf16.msra.mxu0 0
        %1891 = vmatprep.subr.bf16.mxu0 0
        %1892 = vmatpush1.bf16.msra.mxu0 0
        %1893 = vmatprep.subr.bf16.mxu0 0
        %1894 = vmatpush1.bf16.msra.mxu0 0
        %1895 = vmatprep.subr.bf16.mxu0 0
        %1896 = vmatpush1.bf16.msra.mxu0 0
        %1897 = vmatprep.subr.bf16.mxu0 0
        %1898 = vmatpush1.bf16.msra.mxu0 0
        %1899 = vmatprep.subr.bf16.mxu0 0
        %1900 = vmatpush1.bf16.msra.mxu0 0
        %1901 = vmatprep.mubr.bf16.mxu0 0
        %1902 = vmatmul.mubr.bf16.gmra.mrb[0].mxu0 %v1800
        %v1903 = vpop.f32.mrb[0].mxu0
        %v1904 = vadd.f32 %v1820, %v1903
        %v1905 = vpop.f32.mrb[0].mxu0
        %v1906 = vpop.f32.mrb[0].mxu0
        %v1907 = vpop.f32.mrb[0].mxu0
        %1908 = vdwg.mxu0
        %v1909 = vadd.f32 %v1904, %v1731
        %v1910 = vsel %vm469, %v1909, 0.0
        %1911 = vadd.xlane.f32.xlu0 %v1910
        %v1912 = vpop.xlane.xlu0 %1911
        %v1913 = vmul.f32 %v1912, %v1711
        %v1914 = vsub.f32 %v1909, %v1913
        %v1915 = vmul.f32 %v1914, %v1914
        %v1916 = vsel %vm469, %v1915, 0.0
        %1917 = vadd.xlane.f32.xlu0 %v1916
        %v1918 = vpop.xlane.xlu0 %1917
        %v1919 = vmul.f32 %v1918, %v1711
        %v1920 = vadd.f32 %v1919, 1e-05
        %v1921 = vrsqrt.pop %v1920
        %v1922 = vmul.f32 %v1914, %v1921
        %v1923 = vlaneseq
        %v1924 = vshrl.u32 %v1923, 7
        %v1925 = vsub.s32 7, %v1924
        %v1926 = vrot.slane %v450, %v1925
        %v1927 = vmul.f32 %v1922, %v1926
        %v1928 = vlaneseq
        %v1929 = vshrl.u32 %v1928, 7
        %v1930 = vsub.s32 0, %v1929
        %v1931 = vrot.slane %v451, %v1930
        %v1932 = vadd.f32 %v1927, %v1931
        %1933 = vst.msk [vmem:[%s405] sm:$0xff] %vm469, %v1932
        %s1934 = sand.u32 %s250, 1
        %s1935 = scalar_lea.sflag [#allocation3], %s1934
        %s1936 = sand.u32 %s250, 1
        %s1937 = smul.addr %s1936, 8
        %s1938 = scalar_lea.vmem [#allocation2], %s1937
        // Predicated region
        $region57: #{encoder_forward.1} parent=51 // pred_check
          %p1939 = pneg %p260
        $region58: #{encoder_forward.1} parent=51 // pred_check_branch
          %1941 = sbr.rel (%p1939) target = $region60
        $region59: #{encoder_forward.1} parent=51 // pred_region
          %s1943 = ssub.s32 128, 128
          %1944 = vsyncadd %s1935, %s1943
          %s1945 = smul.addr %s26, 128
          %s1946 = scalar_lea.hbm %s8, %s1945
          %s1948 = sshll.u32 %s1938, 4
          %s1949 = int_to_ptr.vmem [resolvable:$true] %s1948
          %1951 = dma.vmem_to_hbm [thread:$0]  %s1949, 128, %s1946, %s1935
        $region60: #{encoder_forward.1} parent=51 // pred_fallthru
          _
      $region52: #{encoder_forward.1} parent=5 // pred_fallthru
        _
      %p1952 = scmp.le.s32.totalorder 2, %s17
      // Predicated region
      $region61: #{encoder_forward.1} parent=5 // pred_check
        %p1953 = pneg %p1952
      $region62: #{encoder_forward.1} parent=5 // pred_check_branch
        %1955 = sbr.rel (%p1953) target = $region64
      $region63: #{encoder_forward.1} parent=5 // pred_region
        %s1956 = ssub.s32 %s17, 2
        // Predicated region
        $region65: #{encoder_forward.1} parent=63 // pred_check
          %p1957 = pneg %p266
        $region66: #{encoder_forward.1} parent=63 // pred_check_branch
          %1959 = sbr.rel (%p1957) target = $region68
        $region67: #{encoder_forward.1} parent=63 // pred_region
          %s1960 = sand.u32 %s251, 1
          %s1961 = scalar_lea.sflag [#allocation3], %s1960
          %s1962 = sand.u32 %s251, 1
          %s1963 = smul.addr %s1962, 8
          %s1964 = scalar_lea.vmem [#allocation2], %s1963
          %1965 = dma.done %s1961, 128
        $region68: #{encoder_forward.1} parent=63 // pred_fallthru
          _
      $region64: #{encoder_forward.1} parent=5 // pred_fallthru
        _
    $region6: #{encoder_forward.1} parent=1 // loop_footer
      %s21 = sadd.s32 1, %s17
    $region7: #{encoder_forward.1} parent=1 // loop_footer_branch
      %16 = sbr.rel target = $region3
    $region8: #{encoder_forward.1} parent=1 // loop_exit
      _
    %1966 = vsyncpa [#allocation3], 1
    %s1967 = scalar_lea.sflag [#allocation3], 1
    %1968 = vsyncpa %s1967, 1

</llo_original>
